<compile_context>
chip_gen: v5e
topology: v5e:2x2
jax: 0.10.0
libtpu: 0.0.40
codegen_flags: <defaults>
</compile_context>

<pallas_src>
import functools

import jax
import jax.numpy as jnp
from jax.experimental import pallas as pl
from jax.experimental.pallas import tpu as pltpu

LEAK = 0.1
NODE_FEATS = 16
EDGE_FEATS = 10
HIDDEN = (64, 32, 16, 8, 2)
DIN = 2 * NODE_FEATS + EDGE_FEATS


def _leaky_relu(v):
    return jnp.where(v > 0, v, LEAK * v)


def edge_mlp_kernel(xs_ref, xd_ref, ee_ref,
                    w1s_ref, w1d_ref, w1e_ref, b1_ref,
                    w2_ref, b2_ref, w3_ref, b3_ref,
                    w4_ref, b4_ref, w5_ref, b5_ref,
                    out_ref):
    # xs/xd: (NODE_FEATS, TILE_E) bf16, ee: (EDGE_FEATS, TILE_E) bf16.
    # Weights are W^T in bf16 (BN already folded into layer 1); biases are f32 columns.
    # Layer 1: split dot over [x_src | x_dst | e] -> no concat buffer needed.
    h = (jnp.dot(w1s_ref[...], xs_ref[...], preferred_element_type=jnp.float32)
         + jnp.dot(w1d_ref[...], xd_ref[...], preferred_element_type=jnp.float32)
         + jnp.dot(w1e_ref[...], ee_ref[...], preferred_element_type=jnp.float32)
         + b1_ref[...])
    h = _leaky_relu(h)                                                   # (64, TILE_E) f32
    h = _leaky_relu(jnp.dot(w2_ref[...], h.astype(jnp.bfloat16),
                            preferred_element_type=jnp.float32) + b2_ref[...])
    h = _leaky_relu(jnp.dot(w3_ref[...], h.astype(jnp.bfloat16),
                            preferred_element_type=jnp.float32) + b3_ref[...])
    h = _leaky_relu(jnp.dot(w4_ref[...], h.astype(jnp.bfloat16),
                            preferred_element_type=jnp.float32) + b4_ref[...])
    out = jnp.dot(w5_ref[...], h.astype(jnp.bfloat16),
                  preferred_element_type=jnp.float32) + b5_ref[...]      # (2, TILE_E)
    out_ref[...] = out.astype(out_ref.dtype)


def _full_spec(arr):
    # Tiny weights / biases: single full-array VMEM-resident block.
    n = arr.ndim
    return pl.BlockSpec(arr.shape, lambda i: (0,) * n)


@functools.partial(jax.jit, static_argnames=("tile_e",))
def edge_predictor_pallas(xs, xd, ee, kp, *, tile_e):
    # xs/xd: (NODE_FEATS, E_pad) bf16, ee: (EDGE_FEATS, E_pad) bf16, E_pad % tile_e == 0.
    e_pad = xs.shape[1]
    grid = (e_pad // tile_e,)
    weights = (kp['w1s'], kp['w1d'], kp['w1e'], kp['b1'],
               kp['w2'], kp['b2'], kp['w3'], kp['b3'],
               kp['w4'], kp['b4'], kp['w5'], kp['b5'])

    def act_spec(feat):
        return pl.BlockSpec((feat, tile_e), lambda i: (0, i))

    out = pl.pallas_call(
        edge_mlp_kernel,
        out_shape=jax.ShapeDtypeStruct((HIDDEN[-1], e_pad), jnp.float32),
        grid_spec=pltpu.PrefetchScalarGridSpec(
            num_scalar_prefetch=0,
            grid=grid,
            in_specs=[act_spec(NODE_FEATS), act_spec(NODE_FEATS), act_spec(EDGE_FEATS)]
                     + [_full_spec(w) for w in weights],
            out_specs=pl.BlockSpec((HIDDEN[-1], tile_e), lambda i: (0, i)),
        ),
        compiler_params=pltpu.CompilerParams(dimension_semantics=("parallel",)),
    )(xs, xd, ee, *weights)
    return out


def _choose_tile_e(n_edges):
    # Prefer big, 256-aligned tiles, but keep >=2 grid steps when the edge count allows it
    # (megacore split on v7x) and avoid huge round-up padding for small graphs.
    for tile in (512, 256, 128):
        if n_edges >= 2 * tile:
            return tile
    return 128


def make_params(key):
    """Deterministic parameter init (PyTorch-Linear-style uniform bounds) + eval-mode BN."""
    dims = (DIN,) + HIDDEN
    params = {}
    keys = jax.random.split(key, 2 * len(HIDDEN) + 8)
    ki = 0
    ws, bs = [], []
    for li in range(len(HIDDEN)):
        fan_in = dims[li]
        bound = 1.0 / jnp.sqrt(jnp.float32(fan_in))
        w = jax.random.uniform(keys[ki], (dims[li], dims[li + 1]),
                               jnp.float32, -bound, bound); ki += 1
        b = jax.random.uniform(keys[ki], (1, dims[li + 1]),
                               jnp.float32, -bound, bound); ki += 1
        ws.append(w); bs.append(b)
    params['ws'], params['bs'] = ws, bs

    eps = 1e-5
    def bn(k, n):
        k1, k2, k3, k4 = jax.random.split(k, 4)
        gamma = 1.0 + 0.1 * jax.random.normal(k1, (n,), jnp.float32)
        beta = 0.1 * jax.random.normal(k2, (n,), jnp.float32)
        mean = 0.1 * jax.random.normal(k3, (n,), jnp.float32)
        var = jnp.abs(jax.random.normal(k4, (n,), jnp.float32)) + 0.5
        scale = gamma / jnp.sqrt(var + eps)
        shift = beta - mean * scale
        return scale, shift
    ns, nh = bn(keys[ki], NODE_FEATS); ki += 1
    es, eh = bn(keys[ki], EDGE_FEATS); ki += 1
    # Concatenated-column BN affine, matching cat[x_src, x_dst, e].
    params['bn_scale'] = jnp.concatenate([ns, ns, es])[None, :]
    params['bn_shift'] = jnp.concatenate([nh, nh, eh])[None, :]
    return params


def fold_params(params):
    """Fold eval-mode BN into layer 1, transpose all weights for the edge-on-lane layout,
    cast matmul operands to bf16 (accumulation stays f32 in-kernel)."""
    ws, bs = params['ws'], params['bs']
    scale = params['bn_scale'][0]                     # (DIN,)
    shift = params['bn_shift'][0]
    w1 = ws[0] * scale[:, None]                       # (DIN, 64)
    b1 = bs[0][0] + shift @ ws[0]                     # (64,)
    w1t = w1.T                                        # (64, DIN), columns = [src | dst | edge]
    kp = {
        'w1s': w1t[:, :NODE_FEATS].astype(jnp.bfloat16),
        'w1d': w1t[:, NODE_FEATS:2 * NODE_FEATS].astype(jnp.bfloat16),
        'w1e': w1t[:, 2 * NODE_FEATS:].astype(jnp.bfloat16),
        'b1': b1[:, None].astype(jnp.float32),
    }
    for li in range(1, len(HIDDEN)):
        kp[f'w{li + 1}'] = ws[li].T.astype(jnp.bfloat16)
        kp[f'b{li + 1}'] = bs[li][0][:, None].astype(jnp.float32)
    return kp


def full_edge_model_forward(data, params, kernel_params=None):
    """data = (vertex_features, edge_features, edge_index, batch) — as in FullEdgeModel.forward."""
    x, e, edge_index, _batch = data[0], data[1], data[2], data[3]
    if kernel_params is None:
        kernel_params = fold_params(params)
    src, dst = edge_index[0], edge_index[1]
    n_edges = e.shape[0]
    tile_e = _choose_tile_e(n_edges)
    e_pad = pl.cdiv(n_edges, tile_e) * tile_e
    pad = e_pad - n_edges
    # Gather node features directly into (feature, edge) layout; no concat buffer in HBM.
    x_t = x.T.astype(jnp.bfloat16)                             # (NODE_FEATS, N)
    xs = jnp.pad(jnp.take(x_t, src, axis=1), ((0, 0), (0, pad)))
    xd = jnp.pad(jnp.take(x_t, dst, axis=1), ((0, 0), (0, pad)))
    ee = jnp.pad(e.T.astype(jnp.bfloat16), ((0, 0), (0, pad)))
    out_t = edge_predictor_pallas(xs, xd, ee, kernel_params, tile_e=tile_e)  # (2, e_pad)
    return {'edge_pred': out_t[:, :n_edges].T.astype(jnp.float32)}


# ---------------------------------------------------------------------------
# References for the self-test.
# ---------------------------------------------------------------------------

def _reference_f32(data, params):
    """Original module semantics: eval BatchNorm1d affine + 5-layer LeakyReLU MLP, pure f32."""
    x, e, edge_index = data[0], data[1], data[2]
    feats = jnp.concatenate([x[edge_index[0]], x[edge_index[1]], e], axis=1)
    h = feats * params['bn_scale'] + params['bn_shift']
    for li in range(len(HIDDEN)):
        h = jnp.dot(h, params['ws'][li]) + params['bs'][li]
        if li < len(HIDDEN) - 1:
            h = _leaky_relu(h)
    return h


def _reference_bf16(data, params):
    """Same math as the kernel (BN folded, bf16 dot operands, f32 accumulation) in plain JAX."""
    kp = fold_params(params)
    x, e, edge_index = data[0], data[1], data[2]
    xs = x[edge_index[0]].astype(jnp.bfloat16)
    xd = x[edge_index[1]].astype(jnp.bfloat16)
    ee = e.astype(jnp.bfloat16)
    h = (jnp.dot(xs, kp['w1s'].T, preferred_element_type=jnp.float32)
         + jnp.dot(xd, kp['w1d'].T, preferred_element_type=jnp.float32)
         + jnp.dot(ee, kp['w1e'].T, preferred_element_type=jnp.float32)
         + kp['b1'][:, 0])
    h = _leaky_relu(h)
    for li in range(2, len(HIDDEN) + 1):
        h = jnp.dot(h.astype(jnp.bfloat16), kp[f'w{li}'].T,
                    preferred_element_type=jnp.float32) + kp[f'b{li}'][:, 0]
        if li < len(HIDDEN):
            h = _leaky_relu(h)
    return h


if __name__ == "__main__":
    key = jax.random.PRNGKey(0)
    k_par, k_x, k_e, k_idx = jax.random.split(key, 4)

    n_nodes = 50
    n_edges = 200
    vertex_features = jax.random.normal(k_x, (n_nodes, NODE_FEATS), jnp.float32)
    edge_features = jax.random.normal(k_e, (n_edges, EDGE_FEATS), jnp.float32)
    edge_index = jax.random.randint(k_idx, (2, n_edges), 0, n_nodes, jnp.int32)
    batch = jnp.zeros((n_nodes,), jnp.int32)

    params = make_params(k_par)
    data = (vertex_features, edge_features, edge_index, batch)

    outdict = full_edge_model_forward(data, params)
    edge_pred = jax.block_until_ready(outdict['edge_pred'])
    assert edge_pred.shape == (n_edges, HIDDEN[-1])

    # Exact-math check (reference uses the same bf16 operands + f32 accumulation).
    ref_exact = _reference_bf16(data, params)
    assert jnp.allclose(edge_pred, ref_exact, atol=2e-3, rtol=2e-3), \
        "mismatch vs bf16-matched reference"

    # Drift check against the original full-f32 module semantics (bf16 quantization only).
    ref_f32 = _reference_f32(data, params)
    assert jnp.allclose(edge_pred, ref_f32, atol=7e-2, rtol=7e-2), \
        "excessive drift vs f32 module semantics"

    print("KERNEL_OK")
</pallas_src>

<mosaic_0001>
module attributes {stable_mosaic.version = 11 : i64} {
  func.func @edge_mlp_kernel(%arg0: i32, %arg1: memref<16x128xbf16, #tpu.memory_space<vmem>>, %arg2: memref<16x128xbf16, #tpu.memory_space<vmem>>, %arg3: memref<10x128xbf16, #tpu.memory_space<vmem>>, %arg4: memref<64x16xbf16, #tpu.memory_space<vmem>>, %arg5: memref<64x16xbf16, #tpu.memory_space<vmem>>, %arg6: memref<64x10xbf16, #tpu.memory_space<vmem>>, %arg7: memref<64x1xf32, #tpu.memory_space<vmem>>, %arg8: memref<32x64xbf16, #tpu.memory_space<vmem>>, %arg9: memref<32x1xf32, #tpu.memory_space<vmem>>, %arg10: memref<16x32xbf16, #tpu.memory_space<vmem>>, %arg11: memref<16x1xf32, #tpu.memory_space<vmem>>, %arg12: memref<8x16xbf16, #tpu.memory_space<vmem>>, %arg13: memref<8x1xf32, #tpu.memory_space<vmem>>, %arg14: memref<2x8xbf16, #tpu.memory_space<vmem>>, %arg15: memref<2x1xf32, #tpu.memory_space<vmem>>, %arg16: memref<2x128xf32, #tpu.memory_space<vmem>>) attributes {dimension_semantics = [#tpu.dimension_semantics<parallel>], iteration_bounds = array<i64: 2>, scalar_prefetch = 0 : i64, scratch_operands = 0 : i64, tpu.core_type = #tpu.core_type<tc>, window_params = [{transform_indices = @transform_0, window_bounds = array<i64: 16, 128>}, {transform_indices = @transform_1, window_bounds = array<i64: 16, 128>}, {transform_indices = @transform_2, window_bounds = array<i64: 10, 128>}, {pipeline_mode = #tpu.pipeline_mode<synchronous>, transform_indices = @transform_3, window_bounds = array<i64: 64, 16>}, {pipeline_mode = #tpu.pipeline_mode<synchronous>, transform_indices = @transform_4, window_bounds = array<i64: 64, 16>}, {pipeline_mode = #tpu.pipeline_mode<synchronous>, transform_indices = @transform_5, window_bounds = array<i64: 64, 10>}, {pipeline_mode = #tpu.pipeline_mode<synchronous>, transform_indices = @transform_6, window_bounds = array<i64: 64, 1>}, {pipeline_mode = #tpu.pipeline_mode<synchronous>, transform_indices = @transform_7, window_bounds = array<i64: 32, 64>}, {pipeline_mode = #tpu.pipeline_mode<synchronous>, transform_indices = @transform_8, window_bounds = array<i64: 32, 1>}, {pipeline_mode = #tpu.pipeline_mode<synchronous>, transform_indices = @transform_9, window_bounds = array<i64: 16, 32>}, {pipeline_mode = #tpu.pipeline_mode<synchronous>, transform_indices = @transform_10, window_bounds = array<i64: 16, 1>}, {pipeline_mode = #tpu.pipeline_mode<synchronous>, transform_indices = @transform_11, window_bounds = array<i64: 8, 16>}, {pipeline_mode = #tpu.pipeline_mode<synchronous>, transform_indices = @transform_12, window_bounds = array<i64: 8, 1>}, {pipeline_mode = #tpu.pipeline_mode<synchronous>, transform_indices = @transform_13, window_bounds = array<i64: 2, 8>}, {pipeline_mode = #tpu.pipeline_mode<synchronous>, transform_indices = @transform_14, window_bounds = array<i64: 2, 1>}, {transform_indices = @transform_15, window_bounds = array<i64: 2, 128>}]} {
    %c0 = arith.constant 0 : index
    %c0_0 = arith.constant 0 : index
    %0 = vector.load %arg4[%c0, %c0_0] : memref<64x16xbf16, #tpu.memory_space<vmem>>, vector<64x16xbf16>
    %c0_1 = arith.constant 0 : index
    %c0_2 = arith.constant 0 : index
    %1 = vector.load %arg1[%c0_1, %c0_2] : memref<16x128xbf16, #tpu.memory_space<vmem>>, vector<16x128xbf16>
    %cst = arith.constant dense<0.000000e+00> : vector<64x128xf32>
    %2 = tpu.matmul %0, %1, %cst {dimension_numbers = #tpu.dot_dimension_numbers<[1], [0], [0], [1], [0, 0, 1, 1], [], []>} : vector<64x16xbf16>, vector<16x128xbf16>, vector<64x128xf32> -> vector<64x128xf32>
    %c0_3 = arith.constant 0 : index
    %c0_4 = arith.constant 0 : index
    %3 = vector.load %arg5[%c0_3, %c0_4] : memref<64x16xbf16, #tpu.memory_space<vmem>>, vector<64x16xbf16>
    %c0_5 = arith.constant 0 : index
    %c0_6 = arith.constant 0 : index
    %4 = vector.load %arg2[%c0_5, %c0_6] : memref<16x128xbf16, #tpu.memory_space<vmem>>, vector<16x128xbf16>
    %cst_7 = arith.constant dense<0.000000e+00> : vector<64x128xf32>
    %5 = tpu.matmul %3, %4, %cst_7 {dimension_numbers = #tpu.dot_dimension_numbers<[1], [0], [0], [1], [0, 0, 1, 1], [], []>} : vector<64x16xbf16>, vector<16x128xbf16>, vector<64x128xf32> -> vector<64x128xf32>
    %6 = arith.addf %2, %5 : vector<64x128xf32>
    %c0_8 = arith.constant 0 : index
    %c0_9 = arith.constant 0 : index
    %7 = vector.load %arg6[%c0_8, %c0_9] : memref<64x10xbf16, #tpu.memory_space<vmem>>, vector<64x10xbf16>
    %c0_10 = arith.constant 0 : index
    %c0_11 = arith.constant 0 : index
    %8 = vector.load %arg3[%c0_10, %c0_11] : memref<10x128xbf16, #tpu.memory_space<vmem>>, vector<10x128xbf16>
    %cst_12 = arith.constant dense<0.000000e+00> : vector<64x128xf32>
    %9 = tpu.matmul %7, %8, %cst_12 {dimension_numbers = #tpu.dot_dimension_numbers<[1], [0], [0], [1], [0, 0, 1, 1], [], []>} : vector<64x10xbf16>, vector<10x128xbf16>, vector<64x128xf32> -> vector<64x128xf32>
    %10 = arith.addf %6, %9 : vector<64x128xf32>
    %c0_13 = arith.constant 0 : index
    %c0_14 = arith.constant 0 : index
    %11 = vector.load %arg7[%c0_13, %c0_14] : memref<64x1xf32, #tpu.memory_space<vmem>>, vector<64x1xf32>
    %12 = vector.broadcast %11 : vector<64x1xf32> to vector<64x128xf32>
    %13 = arith.addf %10, %12 : vector<64x128xf32>
    %cst_15 = arith.constant 0.000000e+00 : f32
    %14 = vector.broadcast %cst_15 : f32 to vector<64x128xf32>
    %15 = arith.cmpf ogt, %13, %14 : vector<64x128xf32>
    %cst_16 = arith.constant 1.000000e-01 : f32
    %16 = vector.broadcast %cst_16 : f32 to vector<64x128xf32>
    %17 = arith.mulf %16, %13 : vector<64x128xf32>
    %18 = arith.select %15, %13, %17 : vector<64x128xi1>, vector<64x128xf32>
    %c0_17 = arith.constant 0 : index
    %c0_18 = arith.constant 0 : index
    %19 = vector.load %arg8[%c0_17, %c0_18] : memref<32x64xbf16, #tpu.memory_space<vmem>>, vector<32x64xbf16>
    %20 = arith.truncf %18 : vector<64x128xf32> to vector<64x128xbf16>
    %cst_19 = arith.constant dense<0.000000e+00> : vector<32x128xf32>
    %21 = tpu.matmul %19, %20, %cst_19 {dimension_numbers = #tpu.dot_dimension_numbers<[1], [0], [0], [1], [0, 0, 1, 1], [], []>} : vector<32x64xbf16>, vector<64x128xbf16>, vector<32x128xf32> -> vector<32x128xf32>
    %c0_20 = arith.constant 0 : index
    %c0_21 = arith.constant 0 : index
    %22 = vector.load %arg9[%c0_20, %c0_21] : memref<32x1xf32, #tpu.memory_space<vmem>>, vector<32x1xf32>
    %23 = vector.broadcast %22 : vector<32x1xf32> to vector<32x128xf32>
    %24 = arith.addf %21, %23 : vector<32x128xf32>
    %cst_22 = arith.constant 0.000000e+00 : f32
    %25 = vector.broadcast %cst_22 : f32 to vector<32x128xf32>
    %26 = arith.cmpf ogt, %24, %25 : vector<32x128xf32>
    %cst_23 = arith.constant 1.000000e-01 : f32
    %27 = vector.broadcast %cst_23 : f32 to vector<32x128xf32>
    %28 = arith.mulf %27, %24 : vector<32x128xf32>
    %29 = arith.select %26, %24, %28 : vector<32x128xi1>, vector<32x128xf32>
    %c0_24 = arith.constant 0 : index
    %c0_25 = arith.constant 0 : index
    %30 = vector.load %arg10[%c0_24, %c0_25] : memref<16x32xbf16, #tpu.memory_space<vmem>>, vector<16x32xbf16>
    %31 = arith.truncf %29 : vector<32x128xf32> to vector<32x128xbf16>
    %cst_26 = arith.constant dense<0.000000e+00> : vector<16x128xf32>
    %32 = tpu.matmul %30, %31, %cst_26 {dimension_numbers = #tpu.dot_dimension_numbers<[1], [0], [0], [1], [0, 0, 1, 1], [], []>} : vector<16x32xbf16>, vector<32x128xbf16>, vector<16x128xf32> -> vector<16x128xf32>
    %c0_27 = arith.constant 0 : index
    %c0_28 = arith.constant 0 : index
    %33 = vector.load %arg11[%c0_27, %c0_28] : memref<16x1xf32, #tpu.memory_space<vmem>>, vector<16x1xf32>
    %34 = vector.broadcast %33 : vector<16x1xf32> to vector<16x128xf32>
    %35 = arith.addf %32, %34 : vector<16x128xf32>
    %cst_29 = arith.constant 0.000000e+00 : f32
    %36 = vector.broadcast %cst_29 : f32 to vector<16x128xf32>
    %37 = arith.cmpf ogt, %35, %36 : vector<16x128xf32>
    %cst_30 = arith.constant 1.000000e-01 : f32
    %38 = vector.broadcast %cst_30 : f32 to vector<16x128xf32>
    %39 = arith.mulf %38, %35 : vector<16x128xf32>
    %40 = arith.select %37, %35, %39 : vector<16x128xi1>, vector<16x128xf32>
    %c0_31 = arith.constant 0 : index
    %c0_32 = arith.constant 0 : index
    %41 = vector.load %arg12[%c0_31, %c0_32] : memref<8x16xbf16, #tpu.memory_space<vmem>>, vector<8x16xbf16>
    %42 = arith.truncf %40 : vector<16x128xf32> to vector<16x128xbf16>
    %cst_33 = arith.constant dense<0.000000e+00> : vector<8x128xf32>
    %43 = tpu.matmul %41, %42, %cst_33 {dimension_numbers = #tpu.dot_dimension_numbers<[1], [0], [0], [1], [0, 0, 1, 1], [], []>} : vector<8x16xbf16>, vector<16x128xbf16>, vector<8x128xf32> -> vector<8x128xf32>
    %c0_34 = arith.constant 0 : index
    %c0_35 = arith.constant 0 : index
    %44 = vector.load %arg13[%c0_34, %c0_35] : memref<8x1xf32, #tpu.memory_space<vmem>>, vector<8x1xf32>
    %45 = vector.broadcast %44 : vector<8x1xf32> to vector<8x128xf32>
    %46 = arith.addf %43, %45 : vector<8x128xf32>
    %cst_36 = arith.constant 0.000000e+00 : f32
    %47 = vector.broadcast %cst_36 : f32 to vector<8x128xf32>
    %48 = arith.cmpf ogt, %46, %47 : vector<8x128xf32>
    %cst_37 = arith.constant 1.000000e-01 : f32
    %49 = vector.broadcast %cst_37 : f32 to vector<8x128xf32>
    %50 = arith.mulf %49, %46 : vector<8x128xf32>
    %51 = arith.select %48, %46, %50 : vector<8x128xi1>, vector<8x128xf32>
    %c0_38 = arith.constant 0 : index
    %c0_39 = arith.constant 0 : index
    %52 = vector.load %arg14[%c0_38, %c0_39] : memref<2x8xbf16, #tpu.memory_space<vmem>>, vector<2x8xbf16>
    %53 = arith.truncf %51 : vector<8x128xf32> to vector<8x128xbf16>
    %cst_40 = arith.constant dense<0.000000e+00> : vector<2x128xf32>
    %54 = tpu.matmul %52, %53, %cst_40 {dimension_numbers = #tpu.dot_dimension_numbers<[1], [0], [0], [1], [0, 0, 1, 1], [], []>} : vector<2x8xbf16>, vector<8x128xbf16>, vector<2x128xf32> -> vector<2x128xf32>
    %c0_41 = arith.constant 0 : index
    %c0_42 = arith.constant 0 : index
    %55 = vector.load %arg15[%c0_41, %c0_42] : memref<2x1xf32, #tpu.memory_space<vmem>>, vector<2x1xf32>
    %56 = vector.broadcast %55 : vector<2x1xf32> to vector<2x128xf32>
    %57 = arith.addf %54, %56 : vector<2x128xf32>
    %c0_43 = arith.constant 0 : index
    %c0_44 = arith.constant 0 : index
    %58 = vector.load %arg16[%c0_43, %c0_44] : memref<2x128xf32, #tpu.memory_space<vmem>>, vector<2x128xf32>
    tpu.vector_store %arg16[%c0_43, %c0_44], %57 {strides = array<i32>} : memref<2x128xf32, #tpu.memory_space<vmem>>, vector<2x128xf32>,
    return
  }
  func.func @transform_0(%arg0: i32) -> (i32, i32) {
    %c0_i32 = arith.constant 0 : i32
    %c0_i32_0 = arith.constant 0 : i32
    return %c0_i32, %arg0 : i32, i32
  }
  func.func @transform_1(%arg0: i32) -> (i32, i32) {
    %c0_i32 = arith.constant 0 : i32
    %c0_i32_0 = arith.constant 0 : i32
    return %c0_i32, %arg0 : i32, i32
  }
  func.func @transform_2(%arg0: i32) -> (i32, i32) {
    %c0_i32 = arith.constant 0 : i32
    %c0_i32_0 = arith.constant 0 : i32
    return %c0_i32, %arg0 : i32, i32
  }
  func.func @transform_3(%arg0: i32) -> (i32, i32) {
    %c0_i32 = arith.constant 0 : i32
    %c0_i32_0 = arith.constant 0 : i32
    %c0_i32_1 = arith.constant 0 : i32
    return %c0_i32, %c0_i32_0 : i32, i32
  }
  func.func @transform_4(%arg0: i32) -> (i32, i32) {
    %c0_i32 = arith.constant 0 : i32
    %c0_i32_0 = arith.constant 0 : i32
    %c0_i32_1 = arith.constant 0 : i32
    return %c0_i32, %c0_i32_0 : i32, i32
  }
  func.func @transform_5(%arg0: i32) -> (i32, i32) {
    %c0_i32 = arith.constant 0 : i32
    %c0_i32_0 = arith.constant 0 : i32
    %c0_i32_1 = arith.constant 0 : i32
    return %c0_i32, %c0_i32_0 : i32, i32
  }
  func.func @transform_6(%arg0: i32) -> (i32, i32) {
    %c0_i32 = arith.constant 0 : i32
    %c0_i32_0 = arith.constant 0 : i32
    %c0_i32_1 = arith.constant 0 : i32
    return %c0_i32, %c0_i32_0 : i32, i32
  }
  func.func @transform_7(%arg0: i32) -> (i32, i32) {
    %c0_i32 = arith.constant 0 : i32
    %c0_i32_0 = arith.constant 0 : i32
    %c0_i32_1 = arith.constant 0 : i32
    return %c0_i32, %c0_i32_0 : i32, i32
  }
  func.func @transform_8(%arg0: i32) -> (i32, i32) {
    %c0_i32 = arith.constant 0 : i32
    %c0_i32_0 = arith.constant 0 : i32
    %c0_i32_1 = arith.constant 0 : i32
    return %c0_i32, %c0_i32_0 : i32, i32
  }
  func.func @transform_9(%arg0: i32) -> (i32, i32) {
    %c0_i32 = arith.constant 0 : i32
    %c0_i32_0 = arith.constant 0 : i32
    %c0_i32_1 = arith.constant 0 : i32
    return %c0_i32, %c0_i32_0 : i32, i32
  }
  func.func @transform_10(%arg0: i32) -> (i32, i32) {
    %c0_i32 = arith.constant 0 : i32
    %c0_i32_0 = arith.constant 0 : i32
    %c0_i32_1 = arith.constant 0 : i32
    return %c0_i32, %c0_i32_0 : i32, i32
  }
  func.func @transform_11(%arg0: i32) -> (i32, i32) {
    %c0_i32 = arith.constant 0 : i32
    %c0_i32_0 = arith.constant 0 : i32
    %c0_i32_1 = arith.constant 0 : i32
    return %c0_i32, %c0_i32_0 : i32, i32
  }
  func.func @transform_12(%arg0: i32) -> (i32, i32) {
    %c0_i32 = arith.constant 0 : i32
    %c0_i32_0 = arith.constant 0 : i32
    %c0_i32_1 = arith.constant 0 : i32
    return %c0_i32, %c0_i32_0 : i32, i32
  }
  func.func @transform_13(%arg0: i32) -> (i32, i32) {
    %c0_i32 = arith.constant 0 : i32
    %c0_i32_0 = arith.constant 0 : i32
    %c0_i32_1 = arith.constant 0 : i32
    return %c0_i32, %c0_i32_0 : i32, i32
  }
  func.func @transform_14(%arg0: i32) -> (i32, i32) {
    %c0_i32 = arith.constant 0 : i32
    %c0_i32_0 = arith.constant 0 : i32
    %c0_i32_1 = arith.constant 0 : i32
    return %c0_i32, %c0_i32_0 : i32, i32
  }
  func.func @transform_15(%arg0: i32) -> (i32, i32) {
    %c0_i32 = arith.constant 0 : i32
    %c0_i32_0 = arith.constant 0 : i32
    return %c0_i32, %arg0 : i32, i32
  }
}

</mosaic_0001>

<llo_original>
// kernel: edge_predictor_pallas.1
$region0: #{edge_predictor_pallas.1}
  #allocation0 [shape = 'u32[]', space=smem, size = 0x4, offset = 0x4, fixed_abs, tag = 'smem constant byte address 0x4 - core index']
  #allocation1 [shape = 'u32[72,128]{1,0:T(1,128)}', space=vmem, size = 0x9000, scoped, tag = 'internal scratch']
  %s0 = inlined_call_operand.vmem [shape: bf16[16,256], index: 0, kind: input, shape index: {}]
  %s1 = inlined_call_operand.vmem [shape: bf16[16,256], index: 1, kind: input, shape index: {}]
  %s2 = inlined_call_operand.vmem [shape: bf16[10,256], index: 2, kind: input, shape index: {}]
  %s3 = inlined_call_operand.vmem [shape: bf16[64,16], index: 3, kind: input, shape index: {}]
  %s4 = inlined_call_operand.vmem [shape: bf16[64,16], index: 4, kind: input, shape index: {}]
  %s5 = inlined_call_operand.vmem [shape: bf16[64,10], index: 5, kind: input, shape index: {}]
  %s6 = inlined_call_operand.vmem [shape: f32[64,1], index: 6, kind: input, shape index: {}]
  %s7 = inlined_call_operand.vmem [shape: bf16[32,64], index: 7, kind: input, shape index: {}]
  %s8 = inlined_call_operand.vmem [shape: f32[32,1], index: 8, kind: input, shape index: {}]
  %s9 = inlined_call_operand.vmem [shape: bf16[16,32], index: 9, kind: input, shape index: {}]
  %s10 = inlined_call_operand.vmem [shape: f32[16,1], index: 10, kind: input, shape index: {}]
  %s11 = inlined_call_operand.vmem [shape: bf16[8,16], index: 11, kind: input, shape index: {}]
  %s12 = inlined_call_operand.vmem [shape: f32[8,1], index: 12, kind: input, shape index: {}]
  %s13 = inlined_call_operand.vmem [shape: bf16[2,8], index: 13, kind: input, shape index: {}]
  %s14 = inlined_call_operand.vmem [shape: f32[2,1], index: 14, kind: input, shape index: {}]
  %s15 = inlined_call_operand.hbm [shape: f32[2,256], index: 15, kind: output, shape index: {}]
  %s16 = sld [smem:[#allocation0]]
  $region216: #{edge_predictor_pallas.1} parent=0
    _
  %s18 = ssub.s32 1, %s16
  %s19 = scalar_select 0, %s18, %s16
  $region1: #{edge_predictor_pallas.1} parent=0
    #allocation2 [shape = 'u8[8192]{0}', space=vmem, size = 0x2000, scoped, tag = 'input window, operand 0']
    #allocation3 [shape = 'u8[8192]{0}', space=vmem, size = 0x2000, scoped, tag = 'input window, operand 1']
    #allocation4 [shape = 'u8[8192]{0}', space=vmem, size = 0x2000, scoped, tag = 'input window, operand 2']
    #allocation5 [shape = 'u8[2048]{0}', space=vmem, size = 0x800, scoped, tag = 'output window, operand 0']
    #allocation6 [shape = 's32[2]{0}', space=sflag, size = 0x8, scoped, tag = 'scoped memory for edge_predictor_pallas.1']
    %20 = vsyncpa [#allocation6], 0
    %s21 = scalar_lea.sflag [#allocation6], 1
    %22 = vsyncpa %s21, 0
    loop: start=0, step=1, limit=4
    $region2: #{edge_predictor_pallas.1} parent=1 // loop_pre_header
      _
    $region3: #{edge_predictor_pallas.1} parent=1 // loop_header
      %s24 = sphi 0, %s28
      %p25 = scmp.ge.s32.totalorder %s24, 4
      %s34 = sphi 0, %s36
      %s37 = sphi 0, %s34
      %s38 = sphi 0, %s37
      %s54 = sphi 0, %s38
      %s60 = sphi 0, %s62
      %s63 = sphi 0, %s60
      %s64 = sphi 0, %s63
      %s80 = sphi 0, %s64
      %s86 = sphi 0, %s88
      %s89 = sphi 0, %s86
      %s90 = sphi 0, %s89
      %s106 = sphi 0, %s90
      %s110 = sphi 0, %s110
      %s112 = sphi 0, %s110
      %s113 = sphi 0, %s112
      %s127 = sphi 0, %s113
      %s131 = sphi 0, %s131
      %s133 = sphi 0, %s131
      %s134 = sphi 0, %s133
      %s148 = sphi 0, %s134
      %s152 = sphi 0, %s152
      %s154 = sphi 0, %s152
      %s155 = sphi 0, %s154
      %s169 = sphi 0, %s155
      %s173 = sphi 0, %s173
      %s175 = sphi 0, %s173
      %s176 = sphi 0, %s175
      %s190 = sphi 0, %s176
      %s194 = sphi 0, %s194
      %s196 = sphi 0, %s194
      %s197 = sphi 0, %s196
      %s211 = sphi 0, %s197
      %s215 = sphi 0, %s215
      %s217 = sphi 0, %s215
      %s218 = sphi 0, %s217
      %s232 = sphi 0, %s218
      %s236 = sphi 0, %s236
      %s238 = sphi 0, %s236
      %s239 = sphi 0, %s238
      %s253 = sphi 0, %s239
      %s257 = sphi 0, %s257
      %s259 = sphi 0, %s257
      %s260 = sphi 0, %s259
      %s274 = sphi 0, %s260
      %s278 = sphi 0, %s278
      %s280 = sphi 0, %s278
      %s281 = sphi 0, %s280
      %s295 = sphi 0, %s281
      %s299 = sphi 0, %s299
      %s301 = sphi 0, %s299
      %s302 = sphi 0, %s301
      %s316 = sphi 0, %s302
      %s320 = sphi 0, %s320
      %s322 = sphi 0, %s320
      %s323 = sphi 0, %s322
      %s337 = sphi 0, %s323
      %s341 = sphi 0, %s341
      %s343 = sphi 0, %s341
      %s344 = sphi 0, %s343
      %s358 = sphi 0, %s344
      %s364 = sphi 0, %s366
      %s367 = sphi 0, %s364
      %s368 = sphi 0, %s367
      %s384 = sphi 0, %s368
    $region4: #{edge_predictor_pallas.1} parent=1 // loop_header_branch
      %27 = sbr.rel (%p25) target = $region8
    $region5: #{edge_predictor_pallas.1} parent=1 // loop_body
      %s29 = ssub.s32 %s24, 1
      %s30 = ssub.s32 %s24, 2
      %s31 = sadd.s32 %s24, 1
      %s32 = ssub.s32 %s24, %s31
      %p33 = scmp.eq.s32.totalorder %s32, 0
      %s35 = sadd.s32 %s34, 1
      %s36 = scalar_select %p33, %s34, %s35
      %p39 = pneg %p33
      %p40 = scmp.eq.s32.totalorder %s24, 1
      %p41 = por %p39, %p40
      %p42 = scmp.ne.s32.totalorder %s34, %s37
      %p43 = scmp.eq.s32.totalorder %s24, 0
      %p44 = por %p42, %p43
      %p45 = scmp.ne.s32.totalorder %s34, %s37
      %p46 = scmp.eq.s32.totalorder %s29, 1
      %p47 = por %p45, %p46
      %p48 = scmp.ne.s32.totalorder %s37, %s38
      %p49 = scmp.eq.s32.totalorder %s29, 0
      %p50 = por %p48, %p49
      %p51 = scmp.ne.s32.totalorder %s37, %s38
      %p52 = scmp.eq.s32.totalorder %s30, 1
      %p53 = por %p51, %p52
      %p55 = scmp.ne.s32.totalorder %s38, %s54
      %p56 = scmp.eq.s32.totalorder %s30, 0
      %p57 = por %p55, %p56
      %s58 = ssub.s32 %s24, %s31
      %p59 = scmp.eq.s32.totalorder %s58, 0
      %s61 = sadd.s32 %s60, 1
      %s62 = scalar_select %p59, %s60, %s61
      %p65 = pneg %p59
      %p66 = scmp.eq.s32.totalorder %s24, 1
      %p67 = por %p65, %p66
      %p68 = scmp.ne.s32.totalorder %s60, %s63
      %p69 = scmp.eq.s32.totalorder %s24, 0
      %p70 = por %p68, %p69
      %p71 = scmp.ne.s32.totalorder %s60, %s63
      %p72 = scmp.eq.s32.totalorder %s29, 1
      %p73 = por %p71, %p72
      %p74 = scmp.ne.s32.totalorder %s63, %s64
      %p75 = scmp.eq.s32.totalorder %s29, 0
      %p76 = por %p74, %p75
      %p77 = scmp.ne.s32.totalorder %s63, %s64
      %p78 = scmp.eq.s32.totalorder %s30, 1
      %p79 = por %p77, %p78
      %p81 = scmp.ne.s32.totalorder %s64, %s80
      %p82 = scmp.eq.s32.totalorder %s30, 0
      %p83 = por %p81, %p82
      %s84 = ssub.s32 %s24, %s31
      %p85 = scmp.eq.s32.totalorder %s84, 0
      %s87 = sadd.s32 %s86, 1
      %s88 = scalar_select %p85, %s86, %s87
      %p91 = pneg %p85
      %p92 = scmp.eq.s32.totalorder %s24, 1
      %p93 = por %p91, %p92
      %p94 = scmp.ne.s32.totalorder %s86, %s89
      %p95 = scmp.eq.s32.totalorder %s24, 0
      %p96 = por %p94, %p95
      %p97 = scmp.ne.s32.totalorder %s86, %s89
      %p98 = scmp.eq.s32.totalorder %s29, 1
      %p99 = por %p97, %p98
      %p100 = scmp.ne.s32.totalorder %s89, %s90
      %p101 = scmp.eq.s32.totalorder %s29, 0
      %p102 = por %p100, %p101
      %p103 = scmp.ne.s32.totalorder %s89, %s90
      %p104 = scmp.eq.s32.totalorder %s30, 1
      %p105 = por %p103, %p104
      %p107 = scmp.ne.s32.totalorder %s90, %s106
      %p108 = scmp.eq.s32.totalorder %s30, 0
      %p109 = por %p107, %p108
      %s111 = sadd.s32 %s110, 1
      %p114 = scmp.eq.s32.totalorder %s24, 1
      %p115 = scmp.ne.s32.totalorder %s110, %s112
      %p116 = scmp.eq.s32.totalorder %s24, 0
      %p117 = por %p115, %p116
      %p118 = scmp.ne.s32.totalorder %s110, %s112
      %p119 = scmp.eq.s32.totalorder %s29, 1
      %p120 = por %p118, %p119
      %p121 = scmp.ne.s32.totalorder %s112, %s113
      %p122 = scmp.eq.s32.totalorder %s29, 0
      %p123 = por %p121, %p122
      %p124 = scmp.ne.s32.totalorder %s112, %s113
      %p125 = scmp.eq.s32.totalorder %s30, 1
      %p126 = por %p124, %p125
      %p128 = scmp.ne.s32.totalorder %s113, %s127
      %p129 = scmp.eq.s32.totalorder %s30, 0
      %p130 = por %p128, %p129
      %s132 = sadd.s32 %s131, 1
      %p135 = scmp.eq.s32.totalorder %s24, 1
      %p136 = scmp.ne.s32.totalorder %s131, %s133
      %p137 = scmp.eq.s32.totalorder %s24, 0
      %p138 = por %p136, %p137
      %p139 = scmp.ne.s32.totalorder %s131, %s133
      %p140 = scmp.eq.s32.totalorder %s29, 1
      %p141 = por %p139, %p140
      %p142 = scmp.ne.s32.totalorder %s133, %s134
      %p143 = scmp.eq.s32.totalorder %s29, 0
      %p144 = por %p142, %p143
      %p145 = scmp.ne.s32.totalorder %s133, %s134
      %p146 = scmp.eq.s32.totalorder %s30, 1
      %p147 = por %p145, %p146
      %p149 = scmp.ne.s32.totalorder %s134, %s148
      %p150 = scmp.eq.s32.totalorder %s30, 0
      %p151 = por %p149, %p150
      %s153 = sadd.s32 %s152, 1
      %p156 = scmp.eq.s32.totalorder %s24, 1
      %p157 = scmp.ne.s32.totalorder %s152, %s154
      %p158 = scmp.eq.s32.totalorder %s24, 0
      %p159 = por %p157, %p158
      %p160 = scmp.ne.s32.totalorder %s152, %s154
      %p161 = scmp.eq.s32.totalorder %s29, 1
      %p162 = por %p160, %p161
      %p163 = scmp.ne.s32.totalorder %s154, %s155
      %p164 = scmp.eq.s32.totalorder %s29, 0
      %p165 = por %p163, %p164
      %p166 = scmp.ne.s32.totalorder %s154, %s155
      %p167 = scmp.eq.s32.totalorder %s30, 1
      %p168 = por %p166, %p167
      %p170 = scmp.ne.s32.totalorder %s155, %s169
      %p171 = scmp.eq.s32.totalorder %s30, 0
      %p172 = por %p170, %p171
      %s174 = sadd.s32 %s173, 1
      %p177 = scmp.eq.s32.totalorder %s24, 1
      %p178 = scmp.ne.s32.totalorder %s173, %s175
      %p179 = scmp.eq.s32.totalorder %s24, 0
      %p180 = por %p178, %p179
      %p181 = scmp.ne.s32.totalorder %s173, %s175
      %p182 = scmp.eq.s32.totalorder %s29, 1
      %p183 = por %p181, %p182
      %p184 = scmp.ne.s32.totalorder %s175, %s176
      %p185 = scmp.eq.s32.totalorder %s29, 0
      %p186 = por %p184, %p185
      %p187 = scmp.ne.s32.totalorder %s175, %s176
      %p188 = scmp.eq.s32.totalorder %s30, 1
      %p189 = por %p187, %p188
      %p191 = scmp.ne.s32.totalorder %s176, %s190
      %p192 = scmp.eq.s32.totalorder %s30, 0
      %p193 = por %p191, %p192
      %s195 = sadd.s32 %s194, 1
      %p198 = scmp.eq.s32.totalorder %s24, 1
      %p199 = scmp.ne.s32.totalorder %s194, %s196
      %p200 = scmp.eq.s32.totalorder %s24, 0
      %p201 = por %p199, %p200
      %p202 = scmp.ne.s32.totalorder %s194, %s196
      %p203 = scmp.eq.s32.totalorder %s29, 1
      %p204 = por %p202, %p203
      %p205 = scmp.ne.s32.totalorder %s196, %s197
      %p206 = scmp.eq.s32.totalorder %s29, 0
      %p207 = por %p205, %p206
      %p208 = scmp.ne.s32.totalorder %s196, %s197
      %p209 = scmp.eq.s32.totalorder %s30, 1
      %p210 = por %p208, %p209
      %p212 = scmp.ne.s32.totalorder %s197, %s211
      %p213 = scmp.eq.s32.totalorder %s30, 0
      %p214 = por %p212, %p213
      %s216 = sadd.s32 %s215, 1
      %p219 = scmp.eq.s32.totalorder %s24, 1
      %p220 = scmp.ne.s32.totalorder %s215, %s217
      %p221 = scmp.eq.s32.totalorder %s24, 0
      %p222 = por %p220, %p221
      %p223 = scmp.ne.s32.totalorder %s215, %s217
      %p224 = scmp.eq.s32.totalorder %s29, 1
      %p225 = por %p223, %p224
      %p226 = scmp.ne.s32.totalorder %s217, %s218
      %p227 = scmp.eq.s32.totalorder %s29, 0
      %p228 = por %p226, %p227
      %p229 = scmp.ne.s32.totalorder %s217, %s218
      %p230 = scmp.eq.s32.totalorder %s30, 1
      %p231 = por %p229, %p230
      %p233 = scmp.ne.s32.totalorder %s218, %s232
      %p234 = scmp.eq.s32.totalorder %s30, 0
      %p235 = por %p233, %p234
      %s237 = sadd.s32 %s236, 1
      %p240 = scmp.eq.s32.totalorder %s24, 1
      %p241 = scmp.ne.s32.totalorder %s236, %s238
      %p242 = scmp.eq.s32.totalorder %s24, 0
      %p243 = por %p241, %p242
      %p244 = scmp.ne.s32.totalorder %s236, %s238
      %p245 = scmp.eq.s32.totalorder %s29, 1
      %p246 = por %p244, %p245
      %p247 = scmp.ne.s32.totalorder %s238, %s239
      %p248 = scmp.eq.s32.totalorder %s29, 0
      %p249 = por %p247, %p248
      %p250 = scmp.ne.s32.totalorder %s238, %s239
      %p251 = scmp.eq.s32.totalorder %s30, 1
      %p252 = por %p250, %p251
      %p254 = scmp.ne.s32.totalorder %s239, %s253
      %p255 = scmp.eq.s32.totalorder %s30, 0
      %p256 = por %p254, %p255
      %s258 = sadd.s32 %s257, 1
      %p261 = scmp.eq.s32.totalorder %s24, 1
      %p262 = scmp.ne.s32.totalorder %s257, %s259
      %p263 = scmp.eq.s32.totalorder %s24, 0
      %p264 = por %p262, %p263
      %p265 = scmp.ne.s32.totalorder %s257, %s259
      %p266 = scmp.eq.s32.totalorder %s29, 1
      %p267 = por %p265, %p266
      %p268 = scmp.ne.s32.totalorder %s259, %s260
      %p269 = scmp.eq.s32.totalorder %s29, 0
      %p270 = por %p268, %p269
      %p271 = scmp.ne.s32.totalorder %s259, %s260
      %p272 = scmp.eq.s32.totalorder %s30, 1
      %p273 = por %p271, %p272
      %p275 = scmp.ne.s32.totalorder %s260, %s274
      %p276 = scmp.eq.s32.totalorder %s30, 0
      %p277 = por %p275, %p276
      %s279 = sadd.s32 %s278, 1
      %p282 = scmp.eq.s32.totalorder %s24, 1
      %p283 = scmp.ne.s32.totalorder %s278, %s280
      %p284 = scmp.eq.s32.totalorder %s24, 0
      %p285 = por %p283, %p284
      %p286 = scmp.ne.s32.totalorder %s278, %s280
      %p287 = scmp.eq.s32.totalorder %s29, 1
      %p288 = por %p286, %p287
      %p289 = scmp.ne.s32.totalorder %s280, %s281
      %p290 = scmp.eq.s32.totalorder %s29, 0
      %p291 = por %p289, %p290
      %p292 = scmp.ne.s32.totalorder %s280, %s281
      %p293 = scmp.eq.s32.totalorder %s30, 1
      %p294 = por %p292, %p293
      %p296 = scmp.ne.s32.totalorder %s281, %s295
      %p297 = scmp.eq.s32.totalorder %s30, 0
      %p298 = por %p296, %p297
      %s300 = sadd.s32 %s299, 1
      %p303 = scmp.eq.s32.totalorder %s24, 1
      %p304 = scmp.ne.s32.totalorder %s299, %s301
      %p305 = scmp.eq.s32.totalorder %s24, 0
      %p306 = por %p304, %p305
      %p307 = scmp.ne.s32.totalorder %s299, %s301
      %p308 = scmp.eq.s32.totalorder %s29, 1
      %p309 = por %p307, %p308
      %p310 = scmp.ne.s32.totalorder %s301, %s302
      %p311 = scmp.eq.s32.totalorder %s29, 0
      %p312 = por %p310, %p311
      %p313 = scmp.ne.s32.totalorder %s301, %s302
      %p314 = scmp.eq.s32.totalorder %s30, 1
      %p315 = por %p313, %p314
      %p317 = scmp.ne.s32.totalorder %s302, %s316
      %p318 = scmp.eq.s32.totalorder %s30, 0
      %p319 = por %p317, %p318
      %s321 = sadd.s32 %s320, 1
      %p324 = scmp.eq.s32.totalorder %s24, 1
      %p325 = scmp.ne.s32.totalorder %s320, %s322
      %p326 = scmp.eq.s32.totalorder %s24, 0
      %p327 = por %p325, %p326
      %p328 = scmp.ne.s32.totalorder %s320, %s322
      %p329 = scmp.eq.s32.totalorder %s29, 1
      %p330 = por %p328, %p329
      %p331 = scmp.ne.s32.totalorder %s322, %s323
      %p332 = scmp.eq.s32.totalorder %s29, 0
      %p333 = por %p331, %p332
      %p334 = scmp.ne.s32.totalorder %s322, %s323
      %p335 = scmp.eq.s32.totalorder %s30, 1
      %p336 = por %p334, %p335
      %p338 = scmp.ne.s32.totalorder %s323, %s337
      %p339 = scmp.eq.s32.totalorder %s30, 0
      %p340 = por %p338, %p339
      %s342 = sadd.s32 %s341, 1
      %p345 = scmp.eq.s32.totalorder %s24, 1
      %p346 = scmp.ne.s32.totalorder %s341, %s343
      %p347 = scmp.eq.s32.totalorder %s24, 0
      %p348 = por %p346, %p347
      %p349 = scmp.ne.s32.totalorder %s341, %s343
      %p350 = scmp.eq.s32.totalorder %s29, 1
      %p351 = por %p349, %p350
      %p352 = scmp.ne.s32.totalorder %s343, %s344
      %p353 = scmp.eq.s32.totalorder %s29, 0
      %p354 = por %p352, %p353
      %p355 = scmp.ne.s32.totalorder %s343, %s344
      %p356 = scmp.eq.s32.totalorder %s30, 1
      %p357 = por %p355, %p356
      %p359 = scmp.ne.s32.totalorder %s344, %s358
      %p360 = scmp.eq.s32.totalorder %s30, 0
      %p361 = por %p359, %p360
      %s362 = ssub.s32 %s24, %s31
      %p363 = scmp.eq.s32.totalorder %s362, 0
      %s365 = sadd.s32 %s364, 1
      %s366 = scalar_select %p363, %s364, %s365
      %p369 = pneg %p363
      %p370 = scmp.eq.s32.totalorder %s24, 1
      %p371 = por %p369, %p370
      %p372 = scmp.ne.s32.totalorder %s364, %s367
      %p373 = scmp.eq.s32.totalorder %s24, 0
      %p374 = por %p372, %p373
      %p375 = scmp.ne.s32.totalorder %s364, %s367
      %p376 = scmp.eq.s32.totalorder %s29, 1
      %p377 = por %p375, %p376
      %p378 = scmp.ne.s32.totalorder %s367, %s368
      %p379 = scmp.eq.s32.totalorder %s29, 0
      %p380 = por %p378, %p379
      %p381 = scmp.ne.s32.totalorder %s367, %s368
      %p382 = scmp.eq.s32.totalorder %s30, 1
      %p383 = por %p381, %p382
      %p385 = scmp.ne.s32.totalorder %s368, %s384
      %p386 = scmp.eq.s32.totalorder %s30, 0
      %p387 = por %p385, %p386
      %p388 = scmp.le.s32.totalorder 1, %s24
      %p389 = scmp.lt.s32.totalorder %s24, 3
      %p390 = pnand %p388, %p389
      %p391 = pneg %p390
      // Predicated region
      $region9: #{edge_predictor_pallas.1} parent=5 // pred_check
        _
      $region10: #{edge_predictor_pallas.1} parent=5 // pred_check_branch
        %393 = sbr.rel (%p390) target = $region12
      $region11: #{edge_predictor_pallas.1} parent=5 // pred_region
        %s394 = ssub.s32 %s24, 1
        // Predicated region
        $region13: #{edge_predictor_pallas.1} parent=11 // pred_check
          %p395 = pneg %p123
        $region14: #{edge_predictor_pallas.1} parent=11 // pred_check_branch
          %397 = sbr.rel (%p395) target = $region16
        $region15: #{edge_predictor_pallas.1} parent=11 // pred_region
          _
        $region16: #{edge_predictor_pallas.1} parent=11 // pred_fallthru
          _
        // Predicated region
        $region17: #{edge_predictor_pallas.1} parent=11 // pred_check
          %p398 = pneg %p144
        $region18: #{edge_predictor_pallas.1} parent=11 // pred_check_branch
          %400 = sbr.rel (%p398) target = $region20
        $region19: #{edge_predictor_pallas.1} parent=11 // pred_region
          _
        $region20: #{edge_predictor_pallas.1} parent=11 // pred_fallthru
          _
        // Predicated region
        $region21: #{edge_predictor_pallas.1} parent=11 // pred_check
          %p401 = pneg %p165
        $region22: #{edge_predictor_pallas.1} parent=11 // pred_check_branch
          %403 = sbr.rel (%p401) target = $region24
        $region23: #{edge_predictor_pallas.1} parent=11 // pred_region
          _
        $region24: #{edge_predictor_pallas.1} parent=11 // pred_fallthru
          _
        // Predicated region
        $region25: #{edge_predictor_pallas.1} parent=11 // pred_check
          %p404 = pneg %p186
        $region26: #{edge_predictor_pallas.1} parent=11 // pred_check_branch
          %406 = sbr.rel (%p404) target = $region28
        $region27: #{edge_predictor_pallas.1} parent=11 // pred_region
          _
        $region28: #{edge_predictor_pallas.1} parent=11 // pred_fallthru
          _
        // Predicated region
        $region29: #{edge_predictor_pallas.1} parent=11 // pred_check
          %p407 = pneg %p207
        $region30: #{edge_predictor_pallas.1} parent=11 // pred_check_branch
          %409 = sbr.rel (%p407) target = $region32
        $region31: #{edge_predictor_pallas.1} parent=11 // pred_region
          _
        $region32: #{edge_predictor_pallas.1} parent=11 // pred_fallthru
          _
        // Predicated region
        $region33: #{edge_predictor_pallas.1} parent=11 // pred_check
          %p410 = pneg %p228
        $region34: #{edge_predictor_pallas.1} parent=11 // pred_check_branch
          %412 = sbr.rel (%p410) target = $region36
        $region35: #{edge_predictor_pallas.1} parent=11 // pred_region
          _
        $region36: #{edge_predictor_pallas.1} parent=11 // pred_fallthru
          _
        // Predicated region
        $region37: #{edge_predictor_pallas.1} parent=11 // pred_check
          %p413 = pneg %p249
        $region38: #{edge_predictor_pallas.1} parent=11 // pred_check_branch
          %415 = sbr.rel (%p413) target = $region40
        $region39: #{edge_predictor_pallas.1} parent=11 // pred_region
          _
        $region40: #{edge_predictor_pallas.1} parent=11 // pred_fallthru
          _
        // Predicated region
        $region41: #{edge_predictor_pallas.1} parent=11 // pred_check
          %p416 = pneg %p270
        $region42: #{edge_predictor_pallas.1} parent=11 // pred_check_branch
          %418 = sbr.rel (%p416) target = $region44
        $region43: #{edge_predictor_pallas.1} parent=11 // pred_region
          _
        $region44: #{edge_predictor_pallas.1} parent=11 // pred_fallthru
          _
        // Predicated region
        $region45: #{edge_predictor_pallas.1} parent=11 // pred_check
          %p419 = pneg %p291
        $region46: #{edge_predictor_pallas.1} parent=11 // pred_check_branch
          %421 = sbr.rel (%p419) target = $region48
        $region47: #{edge_predictor_pallas.1} parent=11 // pred_region
          _
        $region48: #{edge_predictor_pallas.1} parent=11 // pred_fallthru
          _
        // Predicated region
        $region49: #{edge_predictor_pallas.1} parent=11 // pred_check
          %p422 = pneg %p312
        $region50: #{edge_predictor_pallas.1} parent=11 // pred_check_branch
          %424 = sbr.rel (%p422) target = $region52
        $region51: #{edge_predictor_pallas.1} parent=11 // pred_region
          _
        $region52: #{edge_predictor_pallas.1} parent=11 // pred_fallthru
          _
        // Predicated region
        $region53: #{edge_predictor_pallas.1} parent=11 // pred_check
          %p425 = pneg %p333
        $region54: #{edge_predictor_pallas.1} parent=11 // pred_check_branch
          %427 = sbr.rel (%p425) target = $region56
        $region55: #{edge_predictor_pallas.1} parent=11 // pred_region
          _
        $region56: #{edge_predictor_pallas.1} parent=11 // pred_fallthru
          _
        // Predicated region
        $region57: #{edge_predictor_pallas.1} parent=11 // pred_check
          %p428 = pneg %p354
        $region58: #{edge_predictor_pallas.1} parent=11 // pred_check_branch
          %430 = sbr.rel (%p428) target = $region60
        $region59: #{edge_predictor_pallas.1} parent=11 // pred_region
          _
        $region60: #{edge_predictor_pallas.1} parent=11 // pred_fallthru
          _
      $region12: #{edge_predictor_pallas.1} parent=5 // pred_fallthru
        _
      %p431 = scmp.lt.s32.totalorder %s24, 2
      // Predicated region
      $region61: #{edge_predictor_pallas.1} parent=5 // pred_check
        %p432 = pneg %p431
      $region62: #{edge_predictor_pallas.1} parent=5 // pred_check_branch
        %434 = sbr.rel (%p432) target = $region64
      $region63: #{edge_predictor_pallas.1} parent=5 // pred_region
        // Predicated region
        $region65: #{edge_predictor_pallas.1} parent=63 // pred_check
          %p435 = pneg %p44
        $region66: #{edge_predictor_pallas.1} parent=63 // pred_check_branch
          %437 = sbr.rel (%p435) target = $region68
        $region67: #{edge_predictor_pallas.1} parent=63 // pred_region
          %s438 = sand.u32 %s34, 1
          %s439 = sand.u32 %s34, 1
          %s440 = smul.addr %s439, 8
          %s441 = scalar_lea.vmem [#allocation2], %s440
          %s442 = smul.addr %s24, 4
          %s443 = scalar_lea.vmem %s0, %s442
          // Predicated region
          $region69: #{edge_predictor_pallas.1} parent=67 // pred_check
            _
          $region70: #{edge_predictor_pallas.1} parent=67 // pred_check_branch
            %445 = sbr.rel (0) target = $region72
          $region71: #{edge_predictor_pallas.1} parent=67 // pred_region
            // Predicated region
            $region73: #{edge_predictor_pallas.1} parent=71 // pred_check
              _
            $region74: #{edge_predictor_pallas.1} parent=71 // pred_check_branch
              %447 = sbr.rel target = $region76
            $region75: #{edge_predictor_pallas.1} parent=71 // pred_region
              // Predicated region
              $region88: #{edge_predictor_pallas.1} parent=75 // pred_check
                _
              $region89: #{edge_predictor_pallas.1} parent=75 // pred_check_branch
                %465 = sbr.rel (0) target = $region91
              $region90: #{edge_predictor_pallas.1} parent=75 // pred_region
                loop: start=0, step=1, limit=1
                $region92: #{edge_predictor_pallas.1} parent=90 // loop_pre_header
                  _
                $region93: #{edge_predictor_pallas.1} parent=90 // loop_header
                  %s467 = sphi 0, %s471
                  %p468 = scmp.ge.s32.totalorder %s467, 1
                  %s472 = sphi %s443, %s443
                  %s473 = sphi %s441, %s441
                $region94: #{edge_predictor_pallas.1} parent=90 // loop_header_branch
                  %470 = sbr.rel (%p468) target = $region98
                $region95: #{edge_predictor_pallas.1} parent=90 // loop_body
                  _
                $region96: #{edge_predictor_pallas.1} parent=90 // loop_footer
                  %s471 = sadd.s32 1, %s467
                $region97: #{edge_predictor_pallas.1} parent=90 // loop_footer_branch
                  %466 = sbr.rel target = $region93
                $region98: #{edge_predictor_pallas.1} parent=90 // loop_exit
                  _
                %s475 = ssub.s32 16, 1
                loop: start=0, step=1, limit=1
                $region99: #{edge_predictor_pallas.1} parent=90 // loop_pre_header
                  _
                $region100: #{edge_predictor_pallas.1} parent=90 // loop_header
                  %s477 = sphi 0, %s481
                  %p478 = scmp.ge.s32.totalorder %s477, 1
                  %s482 = sphi %s443, %s443
                  %s483 = sphi %s441, %s441
                $region101: #{edge_predictor_pallas.1} parent=90 // loop_header_branch
                  %480 = sbr.rel (%p478) target = $region105
                $region102: #{edge_predictor_pallas.1} parent=90 // loop_body
                  %v484 = vld [vmem:[%s482] sm:%s475]
                  %485 = vst [vmem:[%s483] sm:%s475] %v484
                  %v486 = vld [vmem:[%s482 + $0x8] sm:%s475]
                  %487 = vst [vmem:[%s483 + $0x4] sm:%s475] %v486
                $region103: #{edge_predictor_pallas.1} parent=90 // loop_footer
                  %s481 = sadd.s32 1, %s477
                $region104: #{edge_predictor_pallas.1} parent=90 // loop_footer_branch
                  %476 = sbr.rel target = $region100
                $region105: #{edge_predictor_pallas.1} parent=90 // loop_exit
                  _
              $region91: #{edge_predictor_pallas.1} parent=75 // pred_fallthru
                _
            $region76: #{edge_predictor_pallas.1} parent=71 // pred_fallthru
              _
            // Predicated region
            $region77: #{edge_predictor_pallas.1} parent=71 // pred_check
              _
            $region78: #{edge_predictor_pallas.1} parent=71 // pred_check_branch
              %449 = sbr.rel (0) target = $region80
            $region79: #{edge_predictor_pallas.1} parent=71 // pred_region
              %s451 = ssub.s32 16, 1
              loop: start=0, step=1, limit=1
              $region81: #{edge_predictor_pallas.1} parent=79 // loop_pre_header
                _
              $region82: #{edge_predictor_pallas.1} parent=79 // loop_header
                %s453 = sphi 0, %s457
                %p454 = scmp.ge.s32.totalorder %s453, 1
                %s458 = sphi %s443, %s443
                %s459 = sphi %s441, %s441
              $region83: #{edge_predictor_pallas.1} parent=79 // loop_header_branch
                %456 = sbr.rel (%p454) target = $region87
              $region84: #{edge_predictor_pallas.1} parent=79 // loop_body
                %v460 = vld [vmem:[%s458] sm:%s451]
                %461 = vst [vmem:[%s459] sm:%s451] %v460
                %v462 = vld [vmem:[%s458 + $0x8] sm:%s451]
                %463 = vst [vmem:[%s459 + $0x4] sm:%s451] %v462
              $region85: #{edge_predictor_pallas.1} parent=79 // loop_footer
                %s457 = sadd.s32 1, %s453
              $region86: #{edge_predictor_pallas.1} parent=79 // loop_footer_branch
                %452 = sbr.rel target = $region82
              $region87: #{edge_predictor_pallas.1} parent=79 // loop_exit
                _
            $region80: #{edge_predictor_pallas.1} parent=71 // pred_fallthru
              _
          $region72: #{edge_predictor_pallas.1} parent=67 // pred_fallthru
            _
          %488 = vnop
        $region68: #{edge_predictor_pallas.1} parent=63 // pred_fallthru
          _
        // Predicated region
        $region106: #{edge_predictor_pallas.1} parent=63 // pred_check
          %p489 = pneg %p70
        $region107: #{edge_predictor_pallas.1} parent=63 // pred_check_branch
          %491 = sbr.rel (%p489) target = $region109
        $region108: #{edge_predictor_pallas.1} parent=63 // pred_region
          %s492 = sand.u32 %s60, 1
          %s493 = sand.u32 %s60, 1
          %s494 = smul.addr %s493, 8
          %s495 = scalar_lea.vmem [#allocation3], %s494
          %s496 = smul.addr %s24, 4
          %s497 = scalar_lea.vmem %s1, %s496
          // Predicated region
          $region110: #{edge_predictor_pallas.1} parent=108 // pred_check
            _
          $region111: #{edge_predictor_pallas.1} parent=108 // pred_check_branch
            %499 = sbr.rel (0) target = $region113
          $region112: #{edge_predictor_pallas.1} parent=108 // pred_region
            // Predicated region
            $region114: #{edge_predictor_pallas.1} parent=112 // pred_check
              _
            $region115: #{edge_predictor_pallas.1} parent=112 // pred_check_branch
              %501 = sbr.rel target = $region117
            $region116: #{edge_predictor_pallas.1} parent=112 // pred_region
              // Predicated region
              $region129: #{edge_predictor_pallas.1} parent=116 // pred_check
                _
              $region130: #{edge_predictor_pallas.1} parent=116 // pred_check_branch
                %519 = sbr.rel (0) target = $region132
              $region131: #{edge_predictor_pallas.1} parent=116 // pred_region
                loop: start=0, step=1, limit=1
                $region133: #{edge_predictor_pallas.1} parent=131 // loop_pre_header
                  _
                $region134: #{edge_predictor_pallas.1} parent=131 // loop_header
                  %s521 = sphi 0, %s525
                  %p522 = scmp.ge.s32.totalorder %s521, 1
                  %s526 = sphi %s497, %s497
                  %s527 = sphi %s495, %s495
                $region135: #{edge_predictor_pallas.1} parent=131 // loop_header_branch
                  %524 = sbr.rel (%p522) target = $region139
                $region136: #{edge_predictor_pallas.1} parent=131 // loop_body
                  _
                $region137: #{edge_predictor_pallas.1} parent=131 // loop_footer
                  %s525 = sadd.s32 1, %s521
                $region138: #{edge_predictor_pallas.1} parent=131 // loop_footer_branch
                  %520 = sbr.rel target = $region134
                $region139: #{edge_predictor_pallas.1} parent=131 // loop_exit
                  _
                %s529 = ssub.s32 16, 1
                loop: start=0, step=1, limit=1
                $region140: #{edge_predictor_pallas.1} parent=131 // loop_pre_header
                  _
                $region141: #{edge_predictor_pallas.1} parent=131 // loop_header
                  %s531 = sphi 0, %s535
                  %p532 = scmp.ge.s32.totalorder %s531, 1
                  %s536 = sphi %s497, %s497
                  %s537 = sphi %s495, %s495
                $region142: #{edge_predictor_pallas.1} parent=131 // loop_header_branch
                  %534 = sbr.rel (%p532) target = $region146
                $region143: #{edge_predictor_pallas.1} parent=131 // loop_body
                  %v538 = vld [vmem:[%s536] sm:%s529]
                  %539 = vst [vmem:[%s537] sm:%s529] %v538
                  %v540 = vld [vmem:[%s536 + $0x8] sm:%s529]
                  %541 = vst [vmem:[%s537 + $0x4] sm:%s529] %v540
                $region144: #{edge_predictor_pallas.1} parent=131 // loop_footer
                  %s535 = sadd.s32 1, %s531
                $region145: #{edge_predictor_pallas.1} parent=131 // loop_footer_branch
                  %530 = sbr.rel target = $region141
                $region146: #{edge_predictor_pallas.1} parent=131 // loop_exit
                  _
              $region132: #{edge_predictor_pallas.1} parent=116 // pred_fallthru
                _
            $region117: #{edge_predictor_pallas.1} parent=112 // pred_fallthru
              _
            // Predicated region
            $region118: #{edge_predictor_pallas.1} parent=112 // pred_check
              _
            $region119: #{edge_predictor_pallas.1} parent=112 // pred_check_branch
              %503 = sbr.rel (0) target = $region121
            $region120: #{edge_predictor_pallas.1} parent=112 // pred_region
              %s505 = ssub.s32 16, 1
              loop: start=0, step=1, limit=1
              $region122: #{edge_predictor_pallas.1} parent=120 // loop_pre_header
                _
              $region123: #{edge_predictor_pallas.1} parent=120 // loop_header
                %s507 = sphi 0, %s511
                %p508 = scmp.ge.s32.totalorder %s507, 1
                %s512 = sphi %s497, %s497
                %s513 = sphi %s495, %s495
              $region124: #{edge_predictor_pallas.1} parent=120 // loop_header_branch
                %510 = sbr.rel (%p508) target = $region128
              $region125: #{edge_predictor_pallas.1} parent=120 // loop_body
                %v514 = vld [vmem:[%s512] sm:%s505]
                %515 = vst [vmem:[%s513] sm:%s505] %v514
                %v516 = vld [vmem:[%s512 + $0x8] sm:%s505]
                %517 = vst [vmem:[%s513 + $0x4] sm:%s505] %v516
              $region126: #{edge_predictor_pallas.1} parent=120 // loop_footer
                %s511 = sadd.s32 1, %s507
              $region127: #{edge_predictor_pallas.1} parent=120 // loop_footer_branch
                %506 = sbr.rel target = $region123
              $region128: #{edge_predictor_pallas.1} parent=120 // loop_exit
                _
            $region121: #{edge_predictor_pallas.1} parent=112 // pred_fallthru
              _
          $region113: #{edge_predictor_pallas.1} parent=108 // pred_fallthru
            _
          %542 = vnop
        $region109: #{edge_predictor_pallas.1} parent=63 // pred_fallthru
          _
        // Predicated region
        $region147: #{edge_predictor_pallas.1} parent=63 // pred_check
          %p543 = pneg %p96
        $region148: #{edge_predictor_pallas.1} parent=63 // pred_check_branch
          %545 = sbr.rel (%p543) target = $region150
        $region149: #{edge_predictor_pallas.1} parent=63 // pred_region
          %s546 = sand.u32 %s86, 1
          %s547 = sand.u32 %s86, 1
          %s548 = smul.addr %s547, 8
          %s549 = scalar_lea.vmem [#allocation4], %s548
          %s550 = smul.addr %s24, 4
          %s551 = scalar_lea.vmem %s2, %s550
          // Predicated region
          $region151: #{edge_predictor_pallas.1} parent=149 // pred_check
            _
          $region152: #{edge_predictor_pallas.1} parent=149 // pred_check_branch
            %553 = sbr.rel (0) target = $region154
          $region153: #{edge_predictor_pallas.1} parent=149 // pred_region
            // Predicated region
            $region155: #{edge_predictor_pallas.1} parent=153 // pred_check
              _
            $region156: #{edge_predictor_pallas.1} parent=153 // pred_check_branch
              %555 = sbr.rel target = $region158
            $region157: #{edge_predictor_pallas.1} parent=153 // pred_region
              // Predicated region
              $region170: #{edge_predictor_pallas.1} parent=157 // pred_check
                _
              $region171: #{edge_predictor_pallas.1} parent=157 // pred_check_branch
                %573 = sbr.rel (0) target = $region173
              $region172: #{edge_predictor_pallas.1} parent=157 // pred_region
                loop: start=0, step=1, limit=1
                $region174: #{edge_predictor_pallas.1} parent=172 // loop_pre_header
                  _
                $region175: #{edge_predictor_pallas.1} parent=172 // loop_header
                  %s575 = sphi 0, %s579
                  %p576 = scmp.ge.s32.totalorder %s575, 1
                  %s580 = sphi %s551, %s551
                  %s581 = sphi %s549, %s549
                $region176: #{edge_predictor_pallas.1} parent=172 // loop_header_branch
                  %578 = sbr.rel (%p576) target = $region180
                $region177: #{edge_predictor_pallas.1} parent=172 // loop_body
                  _
                $region178: #{edge_predictor_pallas.1} parent=172 // loop_footer
                  %s579 = sadd.s32 1, %s575
                $region179: #{edge_predictor_pallas.1} parent=172 // loop_footer_branch
                  %574 = sbr.rel target = $region175
                $region180: #{edge_predictor_pallas.1} parent=172 // loop_exit
                  _
                %s583 = ssub.s32 16, 1
                loop: start=0, step=1, limit=1
                $region181: #{edge_predictor_pallas.1} parent=172 // loop_pre_header
                  _
                $region182: #{edge_predictor_pallas.1} parent=172 // loop_header
                  %s585 = sphi 0, %s589
                  %p586 = scmp.ge.s32.totalorder %s585, 1
                  %s590 = sphi %s551, %s551
                  %s591 = sphi %s549, %s549
                $region183: #{edge_predictor_pallas.1} parent=172 // loop_header_branch
                  %588 = sbr.rel (%p586) target = $region187
                $region184: #{edge_predictor_pallas.1} parent=172 // loop_body
                  %v592 = vld [vmem:[%s590] sm:%s583]
                  %593 = vst [vmem:[%s591] sm:%s583] %v592
                  %v594 = vld [vmem:[%s590 + $0x8] sm:%s583]
                  %595 = vst [vmem:[%s591 + $0x4] sm:%s583] %v594
                $region185: #{edge_predictor_pallas.1} parent=172 // loop_footer
                  %s589 = sadd.s32 1, %s585
                $region186: #{edge_predictor_pallas.1} parent=172 // loop_footer_branch
                  %584 = sbr.rel target = $region182
                $region187: #{edge_predictor_pallas.1} parent=172 // loop_exit
                  _
              $region173: #{edge_predictor_pallas.1} parent=157 // pred_fallthru
                _
            $region158: #{edge_predictor_pallas.1} parent=153 // pred_fallthru
              _
            // Predicated region
            $region159: #{edge_predictor_pallas.1} parent=153 // pred_check
              _
            $region160: #{edge_predictor_pallas.1} parent=153 // pred_check_branch
              %557 = sbr.rel (0) target = $region162
            $region161: #{edge_predictor_pallas.1} parent=153 // pred_region
              %s559 = ssub.s32 16, 1
              loop: start=0, step=1, limit=1
              $region163: #{edge_predictor_pallas.1} parent=161 // loop_pre_header
                _
              $region164: #{edge_predictor_pallas.1} parent=161 // loop_header
                %s561 = sphi 0, %s565
                %p562 = scmp.ge.s32.totalorder %s561, 1
                %s566 = sphi %s551, %s551
                %s567 = sphi %s549, %s549
              $region165: #{edge_predictor_pallas.1} parent=161 // loop_header_branch
                %564 = sbr.rel (%p562) target = $region169
              $region166: #{edge_predictor_pallas.1} parent=161 // loop_body
                %v568 = vld [vmem:[%s566] sm:%s559]
                %569 = vst [vmem:[%s567] sm:%s559] %v568
                %v570 = vld [vmem:[%s566 + $0x8] sm:%s559]
                %571 = vst [vmem:[%s567 + $0x4] sm:%s559] %v570
              $region167: #{edge_predictor_pallas.1} parent=161 // loop_footer
                %s565 = sadd.s32 1, %s561
              $region168: #{edge_predictor_pallas.1} parent=161 // loop_footer_branch
                %560 = sbr.rel target = $region164
              $region169: #{edge_predictor_pallas.1} parent=161 // loop_exit
                _
            $region162: #{edge_predictor_pallas.1} parent=153 // pred_fallthru
              _
          $region154: #{edge_predictor_pallas.1} parent=149 // pred_fallthru
            _
          %596 = vnop
        $region150: #{edge_predictor_pallas.1} parent=63 // pred_fallthru
          _
      $region64: #{edge_predictor_pallas.1} parent=5 // pred_fallthru
        _
      %p597 = scmp.le.s32.totalorder 1, %s24
      %p598 = scmp.lt.s32.totalorder %s24, 3
      %p599 = pnand %p597, %p598
      %p600 = pneg %p599
      // Predicated region
      $region188: #{edge_predictor_pallas.1} parent=5 // pred_check
        _
      $region189: #{edge_predictor_pallas.1} parent=5 // pred_check_branch
        %602 = sbr.rel (%p599) target = $region191
      $region190: #{edge_predictor_pallas.1} parent=5 // pred_region
        %s603 = ssub.s32 %s24, 1
        %s604 = sand.u32 %s37, 1
        %s605 = sand.u32 %s37, 1
        %s606 = smul.addr %s605, 8
        %s607 = scalar_lea.vmem [#allocation2], %s606
        // Predicated region
        $region192: #{edge_predictor_pallas.1} parent=190 // pred_check
          %p608 = pneg %p50
        $region193: #{edge_predictor_pallas.1} parent=190 // pred_check_branch
          %610 = sbr.rel (%p608) target = $region195
        $region194: #{edge_predictor_pallas.1} parent=190 // pred_region
          _
        $region195: #{edge_predictor_pallas.1} parent=190 // pred_fallthru
          _
        %s611 = sand.u32 %s63, 1
        %s612 = sand.u32 %s63, 1
        %s613 = smul.addr %s612, 8
        %s614 = scalar_lea.vmem [#allocation3], %s613
        // Predicated region
        $region196: #{edge_predictor_pallas.1} parent=190 // pred_check
          %p615 = pneg %p76
        $region197: #{edge_predictor_pallas.1} parent=190 // pred_check_branch
          %617 = sbr.rel (%p615) target = $region199
        $region198: #{edge_predictor_pallas.1} parent=190 // pred_region
          _
        $region199: #{edge_predictor_pallas.1} parent=190 // pred_fallthru
          _
        %s618 = sand.u32 %s89, 1
        %s619 = sand.u32 %s89, 1
        %s620 = smul.addr %s619, 8
        %s621 = scalar_lea.vmem [#allocation4], %s620
        // Predicated region
        $region200: #{edge_predictor_pallas.1} parent=190 // pred_check
          %p622 = pneg %p102
        $region201: #{edge_predictor_pallas.1} parent=190 // pred_check_branch
          %624 = sbr.rel (%p622) target = $region203
        $region202: #{edge_predictor_pallas.1} parent=190 // pred_region
          _
        $region203: #{edge_predictor_pallas.1} parent=190 // pred_fallthru
          _
        %s625 = sand.u32 %s37, 1
        %s626 = sand.u32 %s37, 1
        %s627 = smul.addr %s626, 8
        %s628 = scalar_lea.vmem [#allocation2], %s627
        %p629 = pneg %p50
        %p630 = pneg %p47
        %s631 = sand.u32 %s63, 1
        %s632 = sand.u32 %s63, 1
        %s633 = smul.addr %s632, 8
        %s634 = scalar_lea.vmem [#allocation3], %s633
        %p635 = pneg %p76
        %p636 = pneg %p73
        %s637 = sand.u32 %s89, 1
        %s638 = sand.u32 %s89, 1
        %s639 = smul.addr %s638, 8
        %s640 = scalar_lea.vmem [#allocation4], %s639
        %p641 = pneg %p102
        %p642 = pneg %p99
        %p643 = pneg %p123
        %p644 = pneg %p120
        %p645 = pneg %p144
        %p646 = pneg %p141
        %p647 = pneg %p165
        %p648 = pneg %p162
        %p649 = pneg %p186
        %p650 = pneg %p183
        %p651 = pneg %p207
        %p652 = pneg %p204
        %p653 = pneg %p228
        %p654 = pneg %p225
        %p655 = pneg %p249
        %p656 = pneg %p246
        %p657 = pneg %p270
        %p658 = pneg %p267
        %p659 = pneg %p291
        %p660 = pneg %p288
        %p661 = pneg %p312
        %p662 = pneg %p309
        %p663 = pneg %p333
        %p664 = pneg %p330
        %p665 = pneg %p354
        %p666 = pneg %p351
        %p667 = pneg %p380
        %p668 = pneg %p377
        %s669 = sand.u32 %s367, 1
        %s670 = scalar_lea.sflag [#allocation6], %s669
        %s671 = sand.u32 %s367, 1
        %s672 = smul.addr %s671, 2
        %s673 = scalar_lea.vmem [#allocation5], %s672
        %v675 = vld [vmem:[%s3] sm:$0xf]
        %v676 = vld [vmem:[%s3 + $0x4] sm:$0xf]
        %v677 = vld [vmem:[%s3 + $0x8] sm:$0xf]
        %v678 = vld [vmem:[%s3 + $0xc] sm:$0xf]
        %v679 = vld [vmem:[%s3 + $0x10] sm:$0xf]
        %v680 = vld [vmem:[%s3 + $0x14] sm:$0xf]
        %v681 = vld [vmem:[%s3 + $0x18] sm:$0xf]
        %v682 = vld [vmem:[%s3 + $0x1c] sm:$0xf]
        %v683 = vld [vmem:[%s607] sm:$0xf]
        %v684 = vld [vmem:[%s607 + $0x4] sm:$0xf]
        %v685 = vld [vmem:[%s4] sm:$0xf]
        %v686 = vld [vmem:[%s4 + $0x4] sm:$0xf]
        %v687 = vld [vmem:[%s4 + $0x8] sm:$0xf]
        %v688 = vld [vmem:[%s4 + $0xc] sm:$0xf]
        %v689 = vld [vmem:[%s4 + $0x10] sm:$0xf]
        %v690 = vld [vmem:[%s4 + $0x14] sm:$0xf]
        %v691 = vld [vmem:[%s4 + $0x18] sm:$0xf]
        %v692 = vld [vmem:[%s4 + $0x1c] sm:$0xf]
        %v693 = vld [vmem:[%s614] sm:$0xf]
        %v694 = vld [vmem:[%s614 + $0x4] sm:$0xf]
        %v703 = vunpack.c.l.b16 %v685
        %v704 = vunpack.c.l.b16 %v686
        %v705 = vunpack.c.l.b16 %v687
        %v706 = vunpack.c.l.b16 %v688
        %v707 = vunpack.c.l.b16 %v689
        %v708 = vunpack.c.l.b16 %v690
        %v709 = vunpack.c.l.b16 %v691
        %v710 = vunpack.c.l.b16 %v692
        %v711 = vpack.c.b16 %v704, %v703
        %v712 = vpack.c.b16 %v706, %v705
        %v713 = vpack.c.b16 %v708, %v707
        %v714 = vpack.c.b16 %v710, %v709
        %v717 = vunpack.c.l.b16 %v693
        %v718 = vunpack.c.l.b16 %v694
        %v719 = vpack.c.b16 %v718, %v717
        %vm721 = vcmask 130048
        %v723 = vsel %vm721, %v711, 0
        %v726 = vsel %vm721, %v712, 0
        %v729 = vsel %vm721, %v713, 0
        %v732 = vsel %vm721, %v714, 0
        %734 = vmatpush.bf16.msra.mxu0 0
        %735 = vmatpush.bf16.msra.mxu0 0
        %736 = vmatpush.bf16.msra.mxu0 0
        %737 = vmatpush.bf16.msra.mxu0 0
        %738 = vmatpush.bf16.msra.mxu0 0
        %739 = vmatpush.bf16.msra.mxu0 0
        %740 = vmatpush.bf16.msra.mxu0 0
        %741 = vmatpush.bf16.msra.mxu0 %v719
        %742 = vmatmul.bf16.gmra.mxu0 %v723
        %v743 = vpop.f32.mrf.mxu0
        %v744 = vadd.f32 0.0, %v743
        %v745 = vpop.f32.mrf.mxu0
        %v746 = vadd.f32 0.0, %v745
        %747 = vmatmul.bf16.gmra.mxu0 %v726
        %v748 = vpop.f32.mrf.mxu0
        %v749 = vadd.f32 0.0, %v748
        %v750 = vpop.f32.mrf.mxu0
        %v751 = vadd.f32 0.0, %v750
        %752 = vmatmul.bf16.gmra.mxu0 %v729
        %v753 = vpop.f32.mrf.mxu0
        %v754 = vadd.f32 0.0, %v753
        %v755 = vpop.f32.mrf.mxu0
        %v756 = vadd.f32 0.0, %v755
        %757 = vmatmul.bf16.gmra.mxu0 %v732
        %v758 = vpop.f32.mrf.mxu0
        %v759 = vadd.f32 0.0, %v758
        %v760 = vpop.f32.mrf.mxu0
        %v761 = vadd.f32 0.0, %v760
        %762 = vdwg.mxu0
        %v771 = vunpack.c.l.b16 %v675
        %v772 = vunpack.c.l.b16 %v676
        %v773 = vunpack.c.l.b16 %v677
        %v774 = vunpack.c.l.b16 %v678
        %v775 = vunpack.c.l.b16 %v679
        %v776 = vunpack.c.l.b16 %v680
        %v777 = vunpack.c.l.b16 %v681
        %v778 = vunpack.c.l.b16 %v682
        %v779 = vpack.c.b16 %v772, %v771
        %v780 = vpack.c.b16 %v774, %v773
        %v781 = vpack.c.b16 %v776, %v775
        %v782 = vpack.c.b16 %v778, %v777
        %v785 = vunpack.c.l.b16 %v683
        %v786 = vunpack.c.l.b16 %v684
        %v787 = vpack.c.b16 %v786, %v785
        %v790 = vsel %vm721, %v779, 0
        %v793 = vsel %vm721, %v780, 0
        %v796 = vsel %vm721, %v781, 0
        %v799 = vsel %vm721, %v782, 0
        %801 = vmatpush.bf16.msra.mxu0 0
        %802 = vmatpush.bf16.msra.mxu0 0
        %803 = vmatpush.bf16.msra.mxu0 0
        %804 = vmatpush.bf16.msra.mxu0 0
        %805 = vmatpush.bf16.msra.mxu0 0
        %806 = vmatpush.bf16.msra.mxu0 0
        %807 = vmatpush.bf16.msra.mxu0 0
        %808 = vmatpush.bf16.msra.mxu0 %v787
        %809 = vmatmul.bf16.gmra.mxu0 %v790
        %v810 = vpop.f32.mrf.mxu0
        %v811 = vadd.f32 %v744, %v810
        %v812 = vpop.f32.mrf.mxu0
        %v813 = vadd.f32 %v746, %v812
        %814 = vmatmul.bf16.gmra.mxu0 %v793
        %v815 = vpop.f32.mrf.mxu0
        %v816 = vadd.f32 %v749, %v815
        %v817 = vpop.f32.mrf.mxu0
        %v818 = vadd.f32 %v751, %v817
        %819 = vmatmul.bf16.gmra.mxu0 %v796
        %v820 = vpop.f32.mrf.mxu0
        %v821 = vadd.f32 %v754, %v820
        %v822 = vpop.f32.mrf.mxu0
        %v823 = vadd.f32 %v756, %v822
        %824 = vmatmul.bf16.gmra.mxu0 %v799
        %v825 = vpop.f32.mrf.mxu0
        %v826 = vadd.f32 %v759, %v825
        %v827 = vpop.f32.mrf.mxu0
        %v828 = vadd.f32 %v761, %v827
        %829 = vdwg.mxu0
        %v830 = vld [vmem:[%s5] sm:$0xf]
        %v831 = vld [vmem:[%s5 + $0x4] sm:$0xf]
        %v832 = vld [vmem:[%s5 + $0x8] sm:$0xf]
        %v833 = vld [vmem:[%s5 + $0xc] sm:$0xf]
        %v834 = vld [vmem:[%s5 + $0x10] sm:$0xf]
        %v835 = vld [vmem:[%s5 + $0x14] sm:$0xf]
        %v836 = vld [vmem:[%s5 + $0x18] sm:$0xf]
        %v837 = vld [vmem:[%s5 + $0x1c] sm:$0xf]
        %v838 = vld [vmem:[%s621] sm:$0xf]
        %v839 = vld [vmem:[%s621 + $0x4] sm:$0x1]
        %v848 = vunpack.c.l.b16 %v830
        %v849 = vunpack.c.l.b16 %v831
        %v850 = vunpack.c.l.b16 %v832
        %v851 = vunpack.c.l.b16 %v833
        %v852 = vunpack.c.l.b16 %v834
        %v853 = vunpack.c.l.b16 %v835
        %v854 = vunpack.c.l.b16 %v836
        %v855 = vunpack.c.l.b16 %v837
        %v856 = vpack.c.b16 %v849, %v848
        %v857 = vpack.c.b16 %v851, %v850
        %v858 = vpack.c.b16 %v853, %v852
        %v859 = vpack.c.b16 %v855, %v854
        %v862 = vunpack.c.l.b16 %v838
        %v863 = vunpack.c.l.b16 %v839
        %v864 = vpack.c.b16 %v863, %v862
        %vm865 = vcmask 80896
        %v867 = vsel %vm865, %v856, 0
        %v870 = vsel %vm865, %v857, 0
        %v873 = vsel %vm865, %v858, 0
        %v876 = vsel %vm865, %v859, 0
        %vm878 = vcmask 1044480
        %v880 = vsel %vm878, %v864, 0
        %882 = vmatpush.bf16.msra.mxu0 0
        %883 = vmatpush.bf16.msra.mxu0 0
        %884 = vmatpush.bf16.msra.mxu0 0
        %885 = vmatpush.bf16.msra.mxu0 0
        %886 = vmatpush.bf16.msra.mxu0 0
        %887 = vmatpush.bf16.msra.mxu0 0
        %888 = vmatpush.bf16.msra.mxu0 0
        %889 = vmatpush.bf16.msra.mxu0 %v880
        %890 = vmatmul.bf16.gmra.mxu0 %v867
        %v891 = vpop.f32.mrf.mxu0
        %v892 = vadd.f32 0.0, %v891
        %v893 = vpop.f32.mrf.mxu0
        %v894 = vadd.f32 0.0, %v893
        %895 = vmatmul.bf16.gmra.mxu0 %v870
        %v896 = vpop.f32.mrf.mxu0
        %v897 = vadd.f32 0.0, %v896
        %v898 = vpop.f32.mrf.mxu0
        %v899 = vadd.f32 0.0, %v898
        %900 = vmatmul.bf16.gmra.mxu0 %v873
        %v901 = vpop.f32.mrf.mxu0
        %v902 = vadd.f32 0.0, %v901
        %v903 = vpop.f32.mrf.mxu0
        %v904 = vadd.f32 0.0, %v903
        %905 = vmatmul.bf16.gmra.mxu0 %v876
        %v906 = vpop.f32.mrf.mxu0
        %v907 = vadd.f32 0.0, %v906
        %v908 = vpop.f32.mrf.mxu0
        %v909 = vadd.f32 0.0, %v908
        %910 = vdwg.mxu0
        %v911 = vadd.f32 %v811, %v892
        %v912 = vadd.f32 %v813, %v894
        %v913 = vadd.f32 %v816, %v897
        %v914 = vadd.f32 %v818, %v899
        %v915 = vadd.f32 %v821, %v902
        %v916 = vadd.f32 %v823, %v904
        %v917 = vadd.f32 %v826, %v907
        %v918 = vadd.f32 %v828, %v909
        %v919 = vld [vmem:[%s6] sm:$0xff]
        %v920 = vld [vmem:[%s6 + $0x8] sm:$0xff]
        %v921 = vld [vmem:[%s6 + $0x10] sm:$0xff]
        %v922 = vld [vmem:[%s6 + $0x18] sm:$0xff]
        %v923 = vld [vmem:[%s6 + $0x20] sm:$0xff]
        %v924 = vld [vmem:[%s6 + $0x28] sm:$0xff]
        %v925 = vld [vmem:[%s6 + $0x30] sm:$0xff]
        %v926 = vld [vmem:[%s6 + $0x38] sm:$0xff]
        %928 = vset.pattern.permute.xlu0 0
        %929 = vperm.xlu0 %928, %v919
        %v930 = vpop.permute.xlu0 %929
        %933 = vset.pattern.permute.xlu0 0
        %934 = vperm.xlu0 %933, %v920
        %v935 = vpop.permute.xlu0 %934
        %938 = vset.pattern.permute.xlu0 0
        %939 = vperm.xlu0 %938, %v921
        %v940 = vpop.permute.xlu0 %939
        %943 = vset.pattern.permute.xlu0 0
        %944 = vperm.xlu0 %943, %v922
        %v945 = vpop.permute.xlu0 %944
        %948 = vset.pattern.permute.xlu0 0
        %949 = vperm.xlu0 %948, %v923
        %v950 = vpop.permute.xlu0 %949
        %953 = vset.pattern.permute.xlu0 0
        %954 = vperm.xlu0 %953, %v924
        %v955 = vpop.permute.xlu0 %954
        %958 = vset.pattern.permute.xlu0 0
        %959 = vperm.xlu0 %958, %v925
        %v960 = vpop.permute.xlu0 %959
        %963 = vset.pattern.permute.xlu0 0
        %964 = vperm.xlu0 %963, %v926
        %v965 = vpop.permute.xlu0 %964
        %v967 = vadd.f32 %v911, %v930
        %v968 = vadd.f32 %v912, %v935
        %v969 = vadd.f32 %v913, %v940
        %v970 = vadd.f32 %v914, %v945
        %v971 = vadd.f32 %v915, %v950
        %v972 = vadd.f32 %v916, %v955
        %v973 = vadd.f32 %v917, %v960
        %v974 = vadd.f32 %v918, %v965
        %vm975 = vcmp.gt.f32.partialorder %v967, 0.0
        %vm976 = vcmp.gt.f32.partialorder %v968, 0.0
        %vm977 = vcmp.gt.f32.partialorder %v969, 0.0
        %vm978 = vcmp.gt.f32.partialorder %v970, 0.0
        %vm979 = vcmp.gt.f32.partialorder %v971, 0.0
        %vm980 = vcmp.gt.f32.partialorder %v972, 0.0
        %vm981 = vcmp.gt.f32.partialorder %v973, 0.0
        %vm982 = vcmp.gt.f32.partialorder %v974, 0.0
        %v983 = vmul.f32 %v967, 0.1
        %v984 = vmul.f32 %v968, 0.1
        %v985 = vmul.f32 %v969, 0.1
        %v986 = vmul.f32 %v970, 0.1
        %v987 = vmul.f32 %v971, 0.1
        %v988 = vmul.f32 %v972, 0.1
        %v989 = vmul.f32 %v973, 0.1
        %v990 = vmul.f32 %v974, 0.1
        %v991 = vsel %vm975, %v967, %v983
        %v992 = vsel %vm976, %v968, %v984
        %v993 = vsel %vm977, %v969, %v985
        %v994 = vsel %vm978, %v970, %v986
        %v995 = vsel %vm979, %v971, %v987
        %v996 = vsel %vm980, %v972, %v988
        %v997 = vsel %vm981, %v973, %v989
        %v998 = vsel %vm982, %v974, %v990
        %v999 = vld [vmem:[%s7] sm:$0xf]
        %v1000 = vld [vmem:[%s7 + $0x4] sm:$0xf]
        %v1001 = vld [vmem:[%s7 + $0x8] sm:$0xf]
        %v1002 = vld [vmem:[%s7 + $0xc] sm:$0xf]
        %v1003 = vpack.c.bf16 %v992, %v991
        %v1004 = vpack.c.bf16 %v994, %v993
        %v1005 = vpack.c.bf16 %v996, %v995
        %v1006 = vpack.c.bf16 %v998, %v997
        %v1007 = vld [vmem:[%s8] sm:$0xff]
        %v1008 = vld [vmem:[%s8 + $0x8] sm:$0xff]
        %v1009 = vld [vmem:[%s8 + $0x10] sm:$0xff]
        %v1010 = vld [vmem:[%s8 + $0x18] sm:$0xff]
        %1012 = vset.pattern.permute.xlu0 0
        %1013 = vperm.xlu0 %1012, %v1007
        %v1014 = vpop.permute.xlu0 %1013
        %1017 = vset.pattern.permute.xlu0 0
        %1018 = vperm.xlu0 %1017, %v1008
        %v1019 = vpop.permute.xlu0 %1018
        %1022 = vset.pattern.permute.xlu0 0
        %1023 = vperm.xlu0 %1022, %v1009
        %v1024 = vpop.permute.xlu0 %1023
        %1027 = vset.pattern.permute.xlu0 0
        %1028 = vperm.xlu0 %1027, %v1010
        %v1029 = vpop.permute.xlu0 %1028
        %v1035 = vunpack.c.l.b16 %v999
        %v1036 = vunpack.c.l.b16 %v1000
        %v1037 = vunpack.c.l.b16 %v1001
        %v1038 = vunpack.c.l.b16 %v1002
        %v1039 = vpack.c.b16 %v1036, %v1035
        %v1040 = vpack.c.b16 %v1038, %v1037
        %vm1041 = vcmask 523264
        %v1043 = vsel %vm1041, %v1039, 0
        %v1046 = vsel %vm1041, %v1040, 0
        %1048 = vmatpush.bf16.msra.mxu0 0
        %1049 = vmatpush.bf16.msra.mxu0 0
        %1050 = vmatpush.bf16.msra.mxu0 0
        %1051 = vmatpush.bf16.msra.mxu0 0
        %1052 = vmatpush.bf16.msra.mxu0 %v1006
        %1053 = vmatpush.bf16.msra.mxu0 %v1005
        %1054 = vmatpush.bf16.msra.mxu0 %v1004
        %1055 = vmatpush.bf16.msra.mxu0 %v1003
        %1056 = vmatmul.bf16.gmra.mxu0 %v1043
        %v1057 = vpop.f32.mrf.mxu0
        %v1058 = vadd.f32 %v1014, %v1057
        %v1059 = vpop.f32.mrf.mxu0
        %v1060 = vadd.f32 %v1019, %v1059
        %1061 = vmatmul.bf16.gmra.mxu0 %v1046
        %v1062 = vpop.f32.mrf.mxu0
        %v1063 = vadd.f32 %v1024, %v1062
        %v1064 = vpop.f32.mrf.mxu0
        %v1065 = vadd.f32 %v1029, %v1064
        %1066 = vdwg.mxu0
        %vm1067 = vcmp.gt.f32.partialorder %v1058, 0.0
        %vm1068 = vcmp.gt.f32.partialorder %v1060, 0.0
        %vm1069 = vcmp.gt.f32.partialorder %v1063, 0.0
        %vm1070 = vcmp.gt.f32.partialorder %v1065, 0.0
        %v1071 = vmul.f32 %v1058, 0.1
        %v1072 = vmul.f32 %v1060, 0.1
        %v1073 = vmul.f32 %v1063, 0.1
        %v1074 = vmul.f32 %v1065, 0.1
        %v1075 = vsel %vm1067, %v1058, %v1071
        %v1076 = vsel %vm1068, %v1060, %v1072
        %v1077 = vsel %vm1069, %v1063, %v1073
        %v1078 = vsel %vm1070, %v1065, %v1074
        %v1079 = vld [vmem:[%s9] sm:$0xf]
        %v1080 = vld [vmem:[%s9 + $0x4] sm:$0xf]
        %v1081 = vpack.c.bf16 %v1076, %v1075
        %v1082 = vpack.c.bf16 %v1078, %v1077
        %v1083 = vld [vmem:[%s10] sm:$0xff]
        %v1084 = vld [vmem:[%s10 + $0x8] sm:$0xff]
        %1086 = vset.pattern.permute.xlu0 0
        %1087 = vperm.xlu0 %1086, %v1083
        %v1088 = vpop.permute.xlu0 %1087
        %1091 = vset.pattern.permute.xlu0 0
        %1092 = vperm.xlu0 %1091, %v1084
        %v1093 = vpop.permute.xlu0 %1092
        %v1097 = vunpack.c.l.b16 %v1079
        %v1098 = vunpack.c.l.b16 %v1080
        %v1099 = vpack.c.b16 %v1098, %v1097
        %vm1100 = vcmask 261120
        %v1102 = vsel %vm1100, %v1099, 0
        %1104 = vmatpush.bf16.msra.mxu0 0
        %1105 = vmatpush.bf16.msra.mxu0 0
        %1106 = vmatpush.bf16.msra.mxu0 0
        %1107 = vmatpush.bf16.msra.mxu0 0
        %1108 = vmatpush.bf16.msra.mxu0 0
        %1109 = vmatpush.bf16.msra.mxu0 0
        %1110 = vmatpush.bf16.msra.mxu0 %v1082
        %1111 = vmatpush.bf16.msra.mxu0 %v1081
        %1112 = vmatmul.bf16.gmra.mxu0 %v1102
        %v1113 = vpop.f32.mrf.mxu0
        %v1114 = vadd.f32 %v1088, %v1113
        %v1115 = vpop.f32.mrf.mxu0
        %v1116 = vadd.f32 %v1093, %v1115
        %1117 = vdwg.mxu0
        %vm1118 = vcmp.gt.f32.partialorder %v1114, 0.0
        %vm1119 = vcmp.gt.f32.partialorder %v1116, 0.0
        %v1120 = vmul.f32 %v1114, 0.1
        %v1121 = vmul.f32 %v1116, 0.1
        %v1122 = vsel %vm1118, %v1114, %v1120
        %v1123 = vsel %vm1119, %v1116, %v1121
        %v1124 = vld [vmem:[%s11] sm:$0xf]
        %v1125 = vpack.c.bf16 %v1123, %v1122
        %v1126 = vld [vmem:[%s12] sm:$0xff]
        %1128 = vset.pattern.permute.xlu0 0
        %1129 = vperm.xlu0 %1128, %v1126
        %v1130 = vpop.permute.xlu0 %1129
        %v1133 = vsel %vm721, %v1124, 0
        %1135 = vmatpush.bf16.msra.mxu0 0
        %1136 = vmatpush.bf16.msra.mxu0 0
        %1137 = vmatpush.bf16.msra.mxu0 0
        %1138 = vmatpush.bf16.msra.mxu0 0
        %1139 = vmatpush.bf16.msra.mxu0 0
        %1140 = vmatpush.bf16.msra.mxu0 0
        %1141 = vmatpush.bf16.msra.mxu0 0
        %1142 = vmatpush.bf16.msra.mxu0 %v1125
        %1143 = vmatmul.bf16.gmra.mxu0 %v1133
        %v1144 = vpop.f32.mrf.mxu0
        %v1145 = vadd.f32 %v1130, %v1144
        %v1146 = vpop.f32.mrf.mxu0
        %1147 = vdwg.mxu0
        %vm1148 = vcmp.gt.f32.partialorder %v1145, 0.0
        %v1149 = vmul.f32 %v1145, 0.1
        %v1150 = vsel %vm1148, %v1145, %v1149
        %v1151 = vld [vmem:[%s13] sm:$0x1]
        %v1152 = vpack.c.bf16 %v1150, %v1150
        %v1153 = vld [vmem:[%s14] sm:$0x3]
        %1155 = vset.pattern.permute.xlu0 0
        %1156 = vperm.xlu0 %1155, %v1153
        %v1157 = vpop.permute.xlu0 %1156
        %vm1159 = vcmask 64512
        %v1161 = vsel %vm1159, %v1151, 0
        %vm1163 = vcmask 1043456
        %v1165 = vsel %vm1163, %v1152, 0
        %1167 = vmatpush.bf16.msra.mxu0 0
        %1168 = vmatpush.bf16.msra.mxu0 0
        %1169 = vmatpush.bf16.msra.mxu0 0
        %1170 = vmatpush.bf16.msra.mxu0 0
        %1171 = vmatpush.bf16.msra.mxu0 0
        %1172 = vmatpush.bf16.msra.mxu0 0
        %1173 = vmatpush.bf16.msra.mxu0 0
        %1174 = vmatpush.bf16.msra.mxu0 %v1165
        %1175 = vmatmul.bf16.gmra.mxu0 %v1161
        %v1176 = vpop.f32.mrf.mxu0
        %v1177 = vadd.f32 %v1157, %v1176
        %v1178 = vpop.f32.mrf.mxu0
        %1179 = vdwg.mxu0
        %1180 = vst [vmem:[%s673] sm:$0x3] %v1177
        %s1181 = sand.u32 %s367, 1
        %s1182 = scalar_lea.sflag [#allocation6], %s1181
        %s1183 = sand.u32 %s367, 1
        %s1184 = smul.addr %s1183, 2
        %s1185 = scalar_lea.vmem [#allocation5], %s1184
        // Predicated region
        $region204: #{edge_predictor_pallas.1} parent=190 // pred_check
          %p1186 = pneg %p377
        $region205: #{edge_predictor_pallas.1} parent=190 // pred_check_branch
          %1188 = sbr.rel (%p1186) target = $region207
        $region206: #{edge_predictor_pallas.1} parent=190 // pred_region
          %1190 = vsyncadd %s1182, 0
          %s1191 = smul.addr %s29, 2
          %s1192 = scalar_lea.hbm %s15, %s1191
          %s1194 = sshll.u32 %s1185, 4
          %s1195 = int_to_ptr.vmem [resolvable:$true] %s1194
          %s1196 = sshll.u32 %s1192, 4
          %s1197 = int_to_ptr.hbm [resolvable:$true] %s1196
          %1199 = dma.vmem_to_hbm [thread:$0]  %s1195, 32, %s1197, %s1182
        $region207: #{edge_predictor_pallas.1} parent=190 // pred_fallthru
          _
      $region191: #{edge_predictor_pallas.1} parent=5 // pred_fallthru
        _
      %p1200 = scmp.le.s32.totalorder 2, %s24
      // Predicated region
      $region208: #{edge_predictor_pallas.1} parent=5 // pred_check
        %p1201 = pneg %p1200
      $region209: #{edge_predictor_pallas.1} parent=5 // pred_check_branch
        %1203 = sbr.rel (%p1201) target = $region211
      $region210: #{edge_predictor_pallas.1} parent=5 // pred_region
        %s1204 = ssub.s32 %s24, 2
        // Predicated region
        $region212: #{edge_predictor_pallas.1} parent=210 // pred_check
          %p1205 = pneg %p383
        $region213: #{edge_predictor_pallas.1} parent=210 // pred_check_branch
          %1207 = sbr.rel (%p1205) target = $region215
        $region214: #{edge_predictor_pallas.1} parent=210 // pred_region
          %s1208 = sand.u32 %s368, 1
          %s1209 = scalar_lea.sflag [#allocation6], %s1208
          %s1210 = sand.u32 %s368, 1
          %s1211 = smul.addr %s1210, 2
          %s1212 = scalar_lea.vmem [#allocation5], %s1211
          %1214 = dma.done %s1209, 32
        $region215: #{edge_predictor_pallas.1} parent=210 // pred_fallthru
          _
      $region211: #{edge_predictor_pallas.1} parent=5 // pred_fallthru
        _
    $region6: #{edge_predictor_pallas.1} parent=1 // loop_footer
      %s28 = sadd.s32 1, %s24
    $region7: #{edge_predictor_pallas.1} parent=1 // loop_footer_branch
      %23 = sbr.rel target = $region3
    $region8: #{edge_predictor_pallas.1} parent=1 // loop_exit
      _
    %1215 = vsyncpa [#allocation6], 1
    %s1216 = scalar_lea.sflag [#allocation6], 1
    %1217 = vsyncpa %s1216, 1

</llo_original>
